<compile_context>
chip_gen: v5e
topology: v5e:2x2
jax: 0.10.0
libtpu: 0.0.40
codegen_flags: <defaults>
</compile_context>

<pallas_src>
import functools

import jax
import jax.numpy as jnp
from jax import lax
from jax.experimental import pallas as pl
from jax.experimental.pallas import tpu as pltpu


def _attention_block_kernel(x_ref, bn1s_ref, bn1b_ref, bn2s_ref, bn2b_ref,
                            bn3s_ref, bn3b_ref, w1_ref, w2_ref, w3_ref,
                            w4_ref, sm1_ref, sp1_ref, o_ref,
                            *, project, lmid, mxu_dtype):
    f32 = jnp.float32
    x = x_ref[...].astype(f32)                                    # (R, W*Cin)

    # bn1 + relu (pre-activation); this also feeds the projection path.
    out1 = jnp.maximum(x * bn1s_ref[...] + bn1b_ref[...], 0.0)
    out1_m = out1.astype(mxu_dtype)

    # conv1: 1x1 -> one block-diagonal matmul, stays lane-dense.
    h = jnp.dot(out1_m, w1_ref[...], preferred_element_type=f32)  # (R, W*Cmid)
    h = jnp.maximum(h * bn2s_ref[...] + bn2b_ref[...], 0.0)

    # conv2: 3x3, stride 1, pad 1.  A single matmul produces the three dy-taps
    # side by side (dx shifts + W-edge padding folded into the banded weight);
    # the dy = -1/+1 pieces are then row-shifted with exact 0/1 matrices that
    # also realize the H-edge zero padding and per-image boundaries.
    t = jnp.dot(h.astype(mxu_dtype), w2_ref[...],
                preferred_element_type=f32)                       # (R, 3*W*Cmid)
    h2 = t[:, lmid:2 * lmid]                                      # dy = 0
    h2 = h2 + jnp.dot(sm1_ref[...], t[:, 0:lmid],                 # dy = -1
                      preferred_element_type=f32)
    h2 = h2 + jnp.dot(sp1_ref[...], t[:, 2 * lmid:],              # dy = +1
                      preferred_element_type=f32)
    h2 = jnp.maximum(h2 * bn3s_ref[...] + bn3b_ref[...], 0.0)

    # conv3: 1x1 -> lane-dense (R, W*Cout) output slab.
    out = jnp.dot(h2.astype(mxu_dtype), w3_ref[...], preferred_element_type=f32)

    # residual path
    if project:
        out = out + jnp.dot(out1_m, w4_ref[...], preferred_element_type=f32)
    else:
        out = out + x
    o_ref[...] = out.astype(o_ref.dtype)


def attention_block_pallas(x_nhwc, params, *, stride=1, images_per_step=1):
    # TODO(synk): stride > 1 (strided conv2 / conv4) is not implemented in-kernel;
    # the default stride=1 path is fully supported.
    assert stride == 1, "only stride=1 is implemented in the Pallas kernel"
    N, H, W, Cin = x_nhwc.shape
    Lin = W * Cin
    Lmid = params["w1"].shape[1]
    Lout = params["w3"].shape[1]
    Cout = Lout // W
    project = (Cin != Cout) or (stride != 1)

    nb = images_per_step
    assert N % nb == 0, "images_per_step must divide the batch"
    n_steps = N // nb
    R = nb * H                                   # rows per grid step

    # Lane-dense 2-D view: row = (n, y), lane = w*C + c.
    x2d = x_nhwc.reshape(N * H, Lin)

    # Exact 0/1 row-shift matrices for the dy = -1 / +1 taps of conv2 (zero
    # rows at the top/bottom of every image give the H-edge zero padding).
    eye_b = jnp.eye(nb, dtype=jnp.float32)
    sm1 = jnp.kron(eye_b, jnp.eye(H, k=-1, dtype=jnp.float32))   # row y <- y-1
    sp1 = jnp.kron(eye_b, jnp.eye(H, k=1, dtype=jnp.float32))    # row y <- y+1

    kernel = functools.partial(_attention_block_kernel, project=project,
                               lmid=Lmid, mxu_dtype=params["w1"].dtype)

    def rep(a):                                  # replicated operand (weights/BN/shift)
        return pl.BlockSpec(a.shape, lambda n: (0, 0))

    args = [x2d,
            params["bn1s"], params["bn1b"], params["bn2s"], params["bn2b"],
            params["bn3s"], params["bn3b"],
            params["w1"], params["w2"], params["w3"], params["w4"],
            sm1, sp1]
    in_specs = [pl.BlockSpec((R, Lin), lambda n: (n, 0))] + [rep(a) for a in args[1:]]

    out2d = pl.pallas_call(
        kernel,
        out_shape=jax.ShapeDtypeStruct((N * H, Lout), x_nhwc.dtype),
        grid=(n_steps,),
        in_specs=in_specs,
        out_specs=pl.BlockSpec((R, Lout), lambda n: (n, 0)),
        compiler_params=pltpu.CompilerParams(
            dimension_semantics=("parallel",)),   # batch axis -> megacore / 2 TCs
    )(*args)
    return out2d.reshape(N, H, W, Cout)


def make_params(key, Cin, Cout, W, *, mxu_dtype=jnp.bfloat16, eps=1e-5):
    """Xavier-normal conv weights + eval-mode BN, pre-packed for the kernel."""
    Cmid = Cout // 4

    def xavier(k, shape_oihw):
        O, I, kh, kw = shape_oihw
        fan_in, fan_out = I * kh * kw, O * kh * kw
        std = (2.0 / (fan_in + fan_out)) ** 0.5
        return std * jax.random.normal(k, shape_oihw, jnp.float32)

    k1, k2, k3, k4 = jax.random.split(key, 4)
    w1_oihw = xavier(k1, (Cmid, Cin, 1, 1))
    w2_oihw = xavier(k2, (Cmid, Cmid, 3, 3))
    w3_oihw = xavier(k3, (Cout, Cmid, 1, 1))
    w4_oihw = xavier(k4, (Cout, Cin, 1, 1))

    # Eval-mode BN (running_mean=0, running_var=1, gamma=1, beta=0) folded into
    # a per-channel scale/bias and tiled to the lane-dense (1, W*C) layout.
    def bn_fold(C, mean=0.0, var=1.0, gamma=1.0, beta=0.0):
        scale = gamma / jnp.sqrt(jnp.float32(var) + eps)
        bias = beta - mean * scale
        s = jnp.full((C,), scale, jnp.float32)
        b = jnp.full((C,), bias, jnp.float32)
        return jnp.tile(s, W)[None, :], jnp.tile(b, W)[None, :]

    bn1s, bn1b = bn_fold(Cin)
    bn2s, bn2b = bn_fold(Cmid)
    bn3s, bn3b = bn_fold(Cmid)

    eye_w = jnp.eye(W, dtype=jnp.float32)

    def blockdiag_1x1(w_oihw):                   # (O, I, 1, 1) -> (W*I, W*O)
        w_io = jnp.transpose(w_oihw[:, :, 0, 0])
        return jnp.kron(eye_w, w_io)

    w1bd = blockdiag_1x1(w1_oihw)                # (W*Cin,  W*Cmid)
    w3bd = blockdiag_1x1(w3_oihw)                # (W*Cmid, W*Cout)
    w4bd = blockdiag_1x1(w4_oihw)                # (W*Cin,  W*Cout)

    # 3x3 conv -> one lane-banded slab: the dx (column) shifts and the W-edge
    # zero padding are absorbed into off-diagonal (Cmid x Cmid) blocks; the
    # three dy taps are laid side by side along the output lanes.
    k2_kkio = jnp.transpose(w2_oihw, (2, 3, 1, 0))   # (ky, kx, in, out)

    def band(dy):
        acc = jnp.zeros((W * Cmid, W * Cmid), jnp.float32)
        for dx in (-1, 0, 1):
            shift = jnp.eye(W, k=-dx, dtype=jnp.float32)  # w_in == w_out + dx
            acc = acc + jnp.kron(shift, k2_kkio[dy + 1, dx + 1])
        return acc

    w2cat = jnp.concatenate([band(-1), band(0), band(1)], axis=1)  # (W*Cmid, 3*W*Cmid)

    params = dict(
        bn1s=bn1s, bn1b=bn1b, bn2s=bn2s, bn2b=bn2b, bn3s=bn3s, bn3b=bn3b,
        w1=w1bd.astype(mxu_dtype), w2=w2cat.astype(mxu_dtype),
        w3=w3bd.astype(mxu_dtype), w4=w4bd.astype(mxu_dtype),
    )
    raw = dict(w1=w1_oihw, w2=w2_oihw, w3=w3_oihw, w4=w4_oihw)
    return params, raw


def ref_forward(x_nhwc, raw, Cin, Cout, stride=1, eps=1e-5):
    """Pure-JAX f32 reference mirroring the PyTorch forward (eval-mode BN)."""
    bn = lambda v: v / jnp.sqrt(1.0 + eps)
    dn = ("NHWC", "HWIO", "NHWC")

    def conv(x, w_oihw, s, pad):
        w = jnp.transpose(w_oihw, (2, 3, 1, 0))
        return lax.conv_general_dilated(x, w, (s, s), pad, dimension_numbers=dn)

    out1 = jax.nn.relu(bn(x_nhwc))
    h = conv(out1, raw["w1"], 1, "VALID")
    h = jax.nn.relu(bn(h))
    h = conv(h, raw["w2"], stride, ((1, 1), (1, 1)))
    h = jax.nn.relu(bn(h))
    h = conv(h, raw["w3"], 1, "VALID")
    if Cin != Cout or stride != 1:
        res = conv(out1, raw["w4"], stride, "VALID")
    else:
        res = x_nhwc
    return h + res


if __name__ == "__main__":
    key = jax.random.PRNGKey(0)
    N, Cin, H, W = 2, 8, 16, 16
    Cout = 32                      # Cin != Cout -> projection (conv4) path exercised
    kx, kp = jax.random.split(key)

    # PyTorch-style NCHW input, transposed to the kernel's NHWC layout.
    x_nchw = jax.random.normal(kx, (N, Cin, H, W), jnp.float32)
    x_nhwc = jnp.transpose(x_nchw, (0, 2, 3, 1))

    params, raw = make_params(kp, Cin, Cout, W)

    # images_per_step=1 keeps grid=(2,) so both v7x TensorCores get one image.
    out = attention_block_pallas(x_nhwc, params, stride=1, images_per_step=1)
    out = jax.block_until_ready(out)
    assert out.shape == (N, H, W, Cout)

    ref = ref_forward(x_nhwc, raw, Cin, Cout, stride=1)
    err = float(jnp.max(jnp.abs(out - ref)))
    # bf16 MXU inputs (f32 accumulation) vs. the pure-f32 reference.
    if err > 5e-2:
        raise SystemExit(f"mismatch vs reference: max abs err = {err}")

    print("KERNEL_OK")
</pallas_src>

<mosaic_0001>
module attributes {stable_mosaic.version = 11 : i64} {
  func.func @_attention_block_kernel(%arg0: i32, %arg1: memref<16x128xf32, #tpu.memory_space<vmem>>, %arg2: memref<1x128xf32, #tpu.memory_space<vmem>>, %arg3: memref<1x128xf32, #tpu.memory_space<vmem>>, %arg4: memref<1x128xf32, #tpu.memory_space<vmem>>, %arg5: memref<1x128xf32, #tpu.memory_space<vmem>>, %arg6: memref<1x128xf32, #tpu.memory_space<vmem>>, %arg7: memref<1x128xf32, #tpu.memory_space<vmem>>, %arg8: memref<128x128xbf16, #tpu.memory_space<vmem>>, %arg9: memref<128x384xbf16, #tpu.memory_space<vmem>>, %arg10: memref<128x512xbf16, #tpu.memory_space<vmem>>, %arg11: memref<128x512xbf16, #tpu.memory_space<vmem>>, %arg12: memref<16x16xf32, #tpu.memory_space<vmem>>, %arg13: memref<16x16xf32, #tpu.memory_space<vmem>>, %arg14: memref<16x512xf32, #tpu.memory_space<vmem>>) attributes {dimension_semantics = [#tpu.dimension_semantics<parallel>], iteration_bounds = array<i64: 2>, scalar_prefetch = 0 : i64, scratch_operands = 0 : i64, tpu.core_type = #tpu.core_type<tc>, window_params = [{transform_indices = @transform_0, window_bounds = array<i64: 16, 128>}, {pipeline_mode = #tpu.pipeline_mode<synchronous>, transform_indices = @transform_1, window_bounds = array<i64: 1, 128>}, {pipeline_mode = #tpu.pipeline_mode<synchronous>, transform_indices = @transform_2, window_bounds = array<i64: 1, 128>}, {pipeline_mode = #tpu.pipeline_mode<synchronous>, transform_indices = @transform_3, window_bounds = array<i64: 1, 128>}, {pipeline_mode = #tpu.pipeline_mode<synchronous>, transform_indices = @transform_4, window_bounds = array<i64: 1, 128>}, {pipeline_mode = #tpu.pipeline_mode<synchronous>, transform_indices = @transform_5, window_bounds = array<i64: 1, 128>}, {pipeline_mode = #tpu.pipeline_mode<synchronous>, transform_indices = @transform_6, window_bounds = array<i64: 1, 128>}, {pipeline_mode = #tpu.pipeline_mode<synchronous>, transform_indices = @transform_7, window_bounds = array<i64: 128, 128>}, {pipeline_mode = #tpu.pipeline_mode<synchronous>, transform_indices = @transform_8, window_bounds = array<i64: 128, 384>}, {pipeline_mode = #tpu.pipeline_mode<synchronous>, transform_indices = @transform_9, window_bounds = array<i64: 128, 512>}, {pipeline_mode = #tpu.pipeline_mode<synchronous>, transform_indices = @transform_10, window_bounds = array<i64: 128, 512>}, {pipeline_mode = #tpu.pipeline_mode<synchronous>, transform_indices = @transform_11, window_bounds = array<i64: 16, 16>}, {pipeline_mode = #tpu.pipeline_mode<synchronous>, transform_indices = @transform_12, window_bounds = array<i64: 16, 16>}, {transform_indices = @transform_13, window_bounds = array<i64: 16, 512>}]} {
    %c0 = arith.constant 0 : index
    %c0_0 = arith.constant 0 : index
    %0 = vector.load %arg1[%c0, %c0_0] : memref<16x128xf32, #tpu.memory_space<vmem>>, vector<16x128xf32>
    %c0_1 = arith.constant 0 : index
    %c0_2 = arith.constant 0 : index
    %1 = vector.load %arg2[%c0_1, %c0_2] : memref<1x128xf32, #tpu.memory_space<vmem>>, vector<1x128xf32>
    %2 = vector.broadcast %1 : vector<1x128xf32> to vector<16x128xf32>
    %3 = arith.mulf %0, %2 : vector<16x128xf32>
    %c0_3 = arith.constant 0 : index
    %c0_4 = arith.constant 0 : index
    %4 = vector.load %arg3[%c0_3, %c0_4] : memref<1x128xf32, #tpu.memory_space<vmem>>, vector<1x128xf32>
    %5 = vector.broadcast %4 : vector<1x128xf32> to vector<16x128xf32>
    %6 = arith.addf %3, %5 : vector<16x128xf32>
    %cst = arith.constant 0.000000e+00 : f32
    %7 = vector.broadcast %cst : f32 to vector<16x128xf32>
    %8 = arith.maximumf %6, %7 : vector<16x128xf32>
    %9 = arith.truncf %8 : vector<16x128xf32> to vector<16x128xbf16>
    %c0_5 = arith.constant 0 : index
    %c0_6 = arith.constant 0 : index
    %10 = vector.load %arg8[%c0_5, %c0_6] : memref<128x128xbf16, #tpu.memory_space<vmem>>, vector<128x128xbf16>
    %cst_7 = arith.constant dense<0.000000e+00> : vector<16x128xf32>
    %11 = tpu.matmul %9, %10, %cst_7 {dimension_numbers = #tpu.dot_dimension_numbers<[1], [0], [0], [1], [0, 0, 1, 1], [], []>} : vector<16x128xbf16>, vector<128x128xbf16>, vector<16x128xf32> -> vector<16x128xf32>
    %c0_8 = arith.constant 0 : index
    %c0_9 = arith.constant 0 : index
    %12 = vector.load %arg4[%c0_8, %c0_9] : memref<1x128xf32, #tpu.memory_space<vmem>>, vector<1x128xf32>
    %13 = vector.broadcast %12 : vector<1x128xf32> to vector<16x128xf32>
    %14 = arith.mulf %11, %13 : vector<16x128xf32>
    %c0_10 = arith.constant 0 : index
    %c0_11 = arith.constant 0 : index
    %15 = vector.load %arg5[%c0_10, %c0_11] : memref<1x128xf32, #tpu.memory_space<vmem>>, vector<1x128xf32>
    %16 = vector.broadcast %15 : vector<1x128xf32> to vector<16x128xf32>
    %17 = arith.addf %14, %16 : vector<16x128xf32>
    %cst_12 = arith.constant 0.000000e+00 : f32
    %18 = vector.broadcast %cst_12 : f32 to vector<16x128xf32>
    %19 = arith.maximumf %17, %18 : vector<16x128xf32>
    %20 = arith.truncf %19 : vector<16x128xf32> to vector<16x128xbf16>
    %c0_13 = arith.constant 0 : index
    %c0_14 = arith.constant 0 : index
    %21 = vector.load %arg9[%c0_13, %c0_14] : memref<128x384xbf16, #tpu.memory_space<vmem>>, vector<128x384xbf16>
    %cst_15 = arith.constant dense<0.000000e+00> : vector<16x384xf32>
    %22 = tpu.matmul %20, %21, %cst_15 {dimension_numbers = #tpu.dot_dimension_numbers<[1], [0], [0], [1], [0, 0, 1, 1], [], []>} : vector<16x128xbf16>, vector<128x384xbf16>, vector<16x384xf32> -> vector<16x384xf32>
    %23 = vector.extract_strided_slice %22 {offsets = [0, 128], sizes = [16, 128], strides = [1, 1]} : vector<16x384xf32> to vector<16x128xf32>
    %c0_16 = arith.constant 0 : index
    %c0_17 = arith.constant 0 : index
    %24 = vector.load %arg12[%c0_16, %c0_17] : memref<16x16xf32, #tpu.memory_space<vmem>>, vector<16x16xf32>
    %25 = vector.extract_strided_slice %22 {offsets = [0, 0], sizes = [16, 128], strides = [1, 1]} : vector<16x384xf32> to vector<16x128xf32>
    %cst_18 = arith.constant dense<0.000000e+00> : vector<16x128xf32>
    %26 = tpu.matmul %24, %25, %cst_18 {dimension_numbers = #tpu.dot_dimension_numbers<[1], [0], [0], [1], [0, 0, 1, 1], [], []>} : vector<16x16xf32>, vector<16x128xf32>, vector<16x128xf32> -> vector<16x128xf32>
    %27 = arith.addf %23, %26 : vector<16x128xf32>
    %c0_19 = arith.constant 0 : index
    %c0_20 = arith.constant 0 : index
    %28 = vector.load %arg13[%c0_19, %c0_20] : memref<16x16xf32, #tpu.memory_space<vmem>>, vector<16x16xf32>
    %29 = vector.extract_strided_slice %22 {offsets = [0, 256], sizes = [16, 128], strides = [1, 1]} : vector<16x384xf32> to vector<16x128xf32>
    %cst_21 = arith.constant dense<0.000000e+00> : vector<16x128xf32>
    %30 = tpu.matmul %28, %29, %cst_21 {dimension_numbers = #tpu.dot_dimension_numbers<[1], [0], [0], [1], [0, 0, 1, 1], [], []>} : vector<16x16xf32>, vector<16x128xf32>, vector<16x128xf32> -> vector<16x128xf32>
    %31 = arith.addf %27, %30 : vector<16x128xf32>
    %c0_22 = arith.constant 0 : index
    %c0_23 = arith.constant 0 : index
    %32 = vector.load %arg6[%c0_22, %c0_23] : memref<1x128xf32, #tpu.memory_space<vmem>>, vector<1x128xf32>
    %33 = vector.broadcast %32 : vector<1x128xf32> to vector<16x128xf32>
    %34 = arith.mulf %31, %33 : vector<16x128xf32>
    %c0_24 = arith.constant 0 : index
    %c0_25 = arith.constant 0 : index
    %35 = vector.load %arg7[%c0_24, %c0_25] : memref<1x128xf32, #tpu.memory_space<vmem>>, vector<1x128xf32>
    %36 = vector.broadcast %35 : vector<1x128xf32> to vector<16x128xf32>
    %37 = arith.addf %34, %36 : vector<16x128xf32>
    %cst_26 = arith.constant 0.000000e+00 : f32
    %38 = vector.broadcast %cst_26 : f32 to vector<16x128xf32>
    %39 = arith.maximumf %37, %38 : vector<16x128xf32>
    %40 = arith.truncf %39 : vector<16x128xf32> to vector<16x128xbf16>
    %c0_27 = arith.constant 0 : index
    %c0_28 = arith.constant 0 : index
    %41 = vector.load %arg10[%c0_27, %c0_28] : memref<128x512xbf16, #tpu.memory_space<vmem>>, vector<128x512xbf16>
    %cst_29 = arith.constant dense<0.000000e+00> : vector<16x512xf32>
    %42 = tpu.matmul %40, %41, %cst_29 {dimension_numbers = #tpu.dot_dimension_numbers<[1], [0], [0], [1], [0, 0, 1, 1], [], []>} : vector<16x128xbf16>, vector<128x512xbf16>, vector<16x512xf32> -> vector<16x512xf32>
    %c0_30 = arith.constant 0 : index
    %c0_31 = arith.constant 0 : index
    %43 = vector.load %arg11[%c0_30, %c0_31] : memref<128x512xbf16, #tpu.memory_space<vmem>>, vector<128x512xbf16>
    %cst_32 = arith.constant dense<0.000000e+00> : vector<16x512xf32>
    %44 = tpu.matmul %9, %43, %cst_32 {dimension_numbers = #tpu.dot_dimension_numbers<[1], [0], [0], [1], [0, 0, 1, 1], [], []>} : vector<16x128xbf16>, vector<128x512xbf16>, vector<16x512xf32> -> vector<16x512xf32>
    %45 = arith.addf %42, %44 : vector<16x512xf32>
    %c0_33 = arith.constant 0 : index
    %c0_34 = arith.constant 0 : index
    %46 = vector.load %arg14[%c0_33, %c0_34] : memref<16x512xf32, #tpu.memory_space<vmem>>, vector<16x512xf32>
    tpu.vector_store %arg14[%c0_33, %c0_34], %45 {strides = array<i32>} : memref<16x512xf32, #tpu.memory_space<vmem>>, vector<16x512xf32>,
    return
  }
  func.func @transform_0(%arg0: i32) -> (i32, i32) {
    %c0_i32 = arith.constant 0 : i32
    %c0_i32_0 = arith.constant 0 : i32
    return %arg0, %c0_i32 : i32, i32
  }
  func.func @transform_1(%arg0: i32) -> (i32, i32) {
    %c0_i32 = arith.constant 0 : i32
    %c0_i32_0 = arith.constant 0 : i32
    %c0_i32_1 = arith.constant 0 : i32
    return %c0_i32, %c0_i32_0 : i32, i32
  }
  func.func @transform_2(%arg0: i32) -> (i32, i32) {
    %c0_i32 = arith.constant 0 : i32
    %c0_i32_0 = arith.constant 0 : i32
    %c0_i32_1 = arith.constant 0 : i32
    return %c0_i32, %c0_i32_0 : i32, i32
  }
  func.func @transform_3(%arg0: i32) -> (i32, i32) {
    %c0_i32 = arith.constant 0 : i32
    %c0_i32_0 = arith.constant 0 : i32
    %c0_i32_1 = arith.constant 0 : i32
    return %c0_i32, %c0_i32_0 : i32, i32
  }
  func.func @transform_4(%arg0: i32) -> (i32, i32) {
    %c0_i32 = arith.constant 0 : i32
    %c0_i32_0 = arith.constant 0 : i32
    %c0_i32_1 = arith.constant 0 : i32
    return %c0_i32, %c0_i32_0 : i32, i32
  }
  func.func @transform_5(%arg0: i32) -> (i32, i32) {
    %c0_i32 = arith.constant 0 : i32
    %c0_i32_0 = arith.constant 0 : i32
    %c0_i32_1 = arith.constant 0 : i32
    return %c0_i32, %c0_i32_0 : i32, i32
  }
  func.func @transform_6(%arg0: i32) -> (i32, i32) {
    %c0_i32 = arith.constant 0 : i32
    %c0_i32_0 = arith.constant 0 : i32
    %c0_i32_1 = arith.constant 0 : i32
    return %c0_i32, %c0_i32_0 : i32, i32
  }
  func.func @transform_7(%arg0: i32) -> (i32, i32) {
    %c0_i32 = arith.constant 0 : i32
    %c0_i32_0 = arith.constant 0 : i32
    %c0_i32_1 = arith.constant 0 : i32
    return %c0_i32, %c0_i32_0 : i32, i32
  }
  func.func @transform_8(%arg0: i32) -> (i32, i32) {
    %c0_i32 = arith.constant 0 : i32
    %c0_i32_0 = arith.constant 0 : i32
    %c0_i32_1 = arith.constant 0 : i32
    return %c0_i32, %c0_i32_0 : i32, i32
  }
  func.func @transform_9(%arg0: i32) -> (i32, i32) {
    %c0_i32 = arith.constant 0 : i32
    %c0_i32_0 = arith.constant 0 : i32
    %c0_i32_1 = arith.constant 0 : i32
    return %c0_i32, %c0_i32_0 : i32, i32
  }
  func.func @transform_10(%arg0: i32) -> (i32, i32) {
    %c0_i32 = arith.constant 0 : i32
    %c0_i32_0 = arith.constant 0 : i32
    %c0_i32_1 = arith.constant 0 : i32
    return %c0_i32, %c0_i32_0 : i32, i32
  }
  func.func @transform_11(%arg0: i32) -> (i32, i32) {
    %c0_i32 = arith.constant 0 : i32
    %c0_i32_0 = arith.constant 0 : i32
    %c0_i32_1 = arith.constant 0 : i32
    return %c0_i32, %c0_i32_0 : i32, i32
  }
  func.func @transform_12(%arg0: i32) -> (i32, i32) {
    %c0_i32 = arith.constant 0 : i32
    %c0_i32_0 = arith.constant 0 : i32
    %c0_i32_1 = arith.constant 0 : i32
    return %c0_i32, %c0_i32_0 : i32, i32
  }
  func.func @transform_13(%arg0: i32) -> (i32, i32) {
    %c0_i32 = arith.constant 0 : i32
    %c0_i32_0 = arith.constant 0 : i32
    return %arg0, %c0_i32 : i32, i32
  }
}

</mosaic_0001>

<llo_original>
// kernel: tpu_custom_call.1
$region0: #{tpu_custom_call.1}
  #allocation0 [shape = 'u32[]', space=smem, size = 0x4, offset = 0x4, fixed_abs, tag = 'smem constant byte address 0x4 - core index']
  #allocation1 [shape = 'u32[72,128]{1,0:T(1,128)}', space=vmem, size = 0x9000, scoped, tag = 'internal scratch']
  %s0 = inlined_call_operand.hbm [shape: f32[32,128], index: 0, kind: input, shape index: {}]
  %s1 = inlined_call_operand.hbm [shape: f32[1,128], index: 1, kind: input, shape index: {}]
  %s2 = inlined_call_operand.vmem [shape: f32[1,128], index: 2, kind: input, shape index: {}]
  %s3 = inlined_call_operand.vmem [shape: f32[1,128], index: 3, kind: input, shape index: {}]
  %s4 = inlined_call_operand.vmem [shape: f32[1,128], index: 4, kind: input, shape index: {}]
  %s5 = inlined_call_operand.vmem [shape: f32[1,128], index: 5, kind: input, shape index: {}]
  %s6 = inlined_call_operand.vmem [shape: f32[1,128], index: 6, kind: input, shape index: {}]
  %s7 = inlined_call_operand.hbm [shape: bf16[128,128], index: 7, kind: input, shape index: {}]
  %s8 = inlined_call_operand.hbm [shape: bf16[128,384], index: 8, kind: input, shape index: {}]
  %s9 = inlined_call_operand.hbm [shape: bf16[128,512], index: 9, kind: input, shape index: {}]
  %s10 = inlined_call_operand.hbm [shape: bf16[128,512], index: 10, kind: input, shape index: {}]
  %s11 = inlined_call_operand.hbm [shape: f32[16,16], index: 11, kind: input, shape index: {}]
  %s12 = inlined_call_operand.hbm [shape: f32[16,16], index: 12, kind: input, shape index: {}]
  %s13 = inlined_call_operand.hbm [shape: f32[32,512], index: 13, kind: output, shape index: {}]
  %s14 = sld [smem:[#allocation0]]
  $region117: #{tpu_custom_call.1} parent=0
    _
  %s16 = ssub.s32 1, %s14
  %s17 = scalar_select 0, %s16, %s14
  $region1: #{tpu_custom_call.1} parent=0
    #allocation2 [shape = 'u8[16384]{0}', space=vmem, size = 0x4000, scoped, tag = 'input window, operand 0']
    #allocation3 [shape = 's32[2]{0}', space=sflag, size = 0x8, scoped, tag = 'scoped memory for tpu_custom_call.1']
    #allocation4 [shape = 's32[2]{0}', space=sflag, size = 0x8, scoped, tag = 'scoped memory for tpu_custom_call.1']
    #allocation5 [shape = 'u8[512]{0}', space=vmem, size = 0x400, scoped, tag = 'input window, operand 1, single buffered']
    #allocation6 [shape = 's32[1]{0}', space=sflag, size = 0x4, scoped, tag = 'scoped memory for tpu_custom_call.1']
    #allocation7 [shape = 'u8[32768]{0}', space=vmem, size = 0x8000, scoped, tag = 'input window, operand 7, single buffered']
    #allocation8 [shape = 'u8[98304]{0}', space=vmem, size = 0x18000, scoped, tag = 'input window, operand 8, single buffered']
    #allocation9 [shape = 's32[1]{0}', space=sflag, size = 0x4, scoped, tag = 'scoped memory for tpu_custom_call.1']
    #allocation10 [shape = 'u8[131072]{0}', space=vmem, size = 0x20000, scoped, tag = 'input window, operand 9, single buffered']
    #allocation11 [shape = 'u8[131072]{0}', space=vmem, size = 0x20000, scoped, tag = 'input window, operand 10, single buffered']
    #allocation12 [shape = 's32[1]{0}', space=sflag, size = 0x4, scoped, tag = 'scoped memory for tpu_custom_call.1']
    #allocation13 [shape = 'u8[8192]{0}', space=vmem, size = 0x2000, scoped, tag = 'input window, operand 11, single buffered']
    #allocation14 [shape = 'u8[8192]{0}', space=vmem, size = 0x2000, scoped, tag = 'input window, operand 12, single buffered']
    #allocation15 [shape = 's32[1]{0}', space=sflag, size = 0x4, scoped, tag = 'scoped memory for tpu_custom_call.1']
    #allocation16 [shape = 'u8[65536]{0}', space=vmem, size = 0x10000, scoped, tag = 'output window, operand 0']
    %18 = vsyncpa [#allocation3], 0
    %s19 = scalar_lea.sflag [#allocation3], 1
    %20 = vsyncpa %s19, 0
    %21 = vsyncpa [#allocation6], 0
    %22 = vsyncpa [#allocation9], 0
    %23 = vsyncpa [#allocation12], 0
    %24 = vsyncpa [#allocation15], 0
    %25 = vsyncpa [#allocation4], 0
    %s26 = scalar_lea.sflag [#allocation4], 1
    %27 = vsyncpa %s26, 0
    loop: start=0, step=1, limit=4
    $region2: #{tpu_custom_call.1} parent=1 // loop_pre_header
      _
    $region3: #{tpu_custom_call.1} parent=1 // loop_header
      %s29 = sphi 0, %s33
      %p30 = scmp.ge.s32.totalorder %s29, 4
      %s39 = sphi 0, %s41
      %s42 = sphi 0, %s39
      %s43 = sphi 0, %s42
      %s59 = sphi 0, %s43
      %s63 = sphi 0, %s63
      %s65 = sphi 0, %s63
      %s66 = sphi 0, %s65
      %s80 = sphi 0, %s66
      %s84 = sphi 0, %s84
      %s86 = sphi 0, %s84
      %s87 = sphi 0, %s86
      %s101 = sphi 0, %s87
      %s105 = sphi 0, %s105
      %s107 = sphi 0, %s105
      %s108 = sphi 0, %s107
      %s122 = sphi 0, %s108
      %s126 = sphi 0, %s126
      %s128 = sphi 0, %s126
      %s129 = sphi 0, %s128
      %s143 = sphi 0, %s129
      %s147 = sphi 0, %s147
      %s149 = sphi 0, %s147
      %s150 = sphi 0, %s149
      %s164 = sphi 0, %s150
      %s168 = sphi 0, %s168
      %s170 = sphi 0, %s168
      %s171 = sphi 0, %s170
      %s185 = sphi 0, %s171
      %s189 = sphi 0, %s189
      %s191 = sphi 0, %s189
      %s192 = sphi 0, %s191
      %s206 = sphi 0, %s192
      %s210 = sphi 0, %s210
      %s212 = sphi 0, %s210
      %s213 = sphi 0, %s212
      %s227 = sphi 0, %s213
      %s231 = sphi 0, %s231
      %s233 = sphi 0, %s231
      %s234 = sphi 0, %s233
      %s248 = sphi 0, %s234
      %s252 = sphi 0, %s252
      %s254 = sphi 0, %s252
      %s255 = sphi 0, %s254
      %s269 = sphi 0, %s255
      %s273 = sphi 0, %s273
      %s275 = sphi 0, %s273
      %s276 = sphi 0, %s275
      %s290 = sphi 0, %s276
      %s294 = sphi 0, %s294
      %s296 = sphi 0, %s294
      %s297 = sphi 0, %s296
      %s311 = sphi 0, %s297
      %s317 = sphi 0, %s319
      %s320 = sphi 0, %s317
      %s321 = sphi 0, %s320
      %s337 = sphi 0, %s321
    $region4: #{tpu_custom_call.1} parent=1 // loop_header_branch
      %32 = sbr.rel (%p30) target = $region8
    $region5: #{tpu_custom_call.1} parent=1 // loop_body
      %s34 = ssub.s32 %s29, 1
      %s35 = ssub.s32 %s29, 2
      %s36 = sadd.s32 %s29, 1
      %s37 = ssub.s32 %s29, %s36
      %p38 = scmp.eq.s32.totalorder %s37, 0
      %s40 = sadd.s32 %s39, 1
      %s41 = scalar_select %p38, %s39, %s40
      %p44 = pneg %p38
      %p45 = scmp.eq.s32.totalorder %s29, 1
      %p46 = por %p44, %p45
      %p47 = scmp.ne.s32.totalorder %s39, %s42
      %p48 = scmp.eq.s32.totalorder %s29, 0
      %p49 = por %p47, %p48
      %p50 = scmp.ne.s32.totalorder %s39, %s42
      %p51 = scmp.eq.s32.totalorder %s34, 1
      %p52 = por %p50, %p51
      %p53 = scmp.ne.s32.totalorder %s42, %s43
      %p54 = scmp.eq.s32.totalorder %s34, 0
      %p55 = por %p53, %p54
      %p56 = scmp.ne.s32.totalorder %s42, %s43
      %p57 = scmp.eq.s32.totalorder %s35, 1
      %p58 = por %p56, %p57
      %p60 = scmp.ne.s32.totalorder %s43, %s59
      %p61 = scmp.eq.s32.totalorder %s35, 0
      %p62 = por %p60, %p61
      %s64 = sadd.s32 %s63, 1
      %p67 = scmp.eq.s32.totalorder %s29, 1
      %p68 = scmp.ne.s32.totalorder %s63, %s65
      %p69 = scmp.eq.s32.totalorder %s29, 0
      %p70 = por %p68, %p69
      %p71 = scmp.ne.s32.totalorder %s63, %s65
      %p72 = scmp.eq.s32.totalorder %s34, 1
      %p73 = por %p71, %p72
      %p74 = scmp.ne.s32.totalorder %s65, %s66
      %p75 = scmp.eq.s32.totalorder %s34, 0
      %p76 = por %p74, %p75
      %p77 = scmp.ne.s32.totalorder %s65, %s66
      %p78 = scmp.eq.s32.totalorder %s35, 1
      %p79 = por %p77, %p78
      %p81 = scmp.ne.s32.totalorder %s66, %s80
      %p82 = scmp.eq.s32.totalorder %s35, 0
      %p83 = por %p81, %p82
      %s85 = sadd.s32 %s84, 1
      %p88 = scmp.eq.s32.totalorder %s29, 1
      %p89 = scmp.ne.s32.totalorder %s84, %s86
      %p90 = scmp.eq.s32.totalorder %s29, 0
      %p91 = por %p89, %p90
      %p92 = scmp.ne.s32.totalorder %s84, %s86
      %p93 = scmp.eq.s32.totalorder %s34, 1
      %p94 = por %p92, %p93
      %p95 = scmp.ne.s32.totalorder %s86, %s87
      %p96 = scmp.eq.s32.totalorder %s34, 0
      %p97 = por %p95, %p96
      %p98 = scmp.ne.s32.totalorder %s86, %s87
      %p99 = scmp.eq.s32.totalorder %s35, 1
      %p100 = por %p98, %p99
      %p102 = scmp.ne.s32.totalorder %s87, %s101
      %p103 = scmp.eq.s32.totalorder %s35, 0
      %p104 = por %p102, %p103
      %s106 = sadd.s32 %s105, 1
      %p109 = scmp.eq.s32.totalorder %s29, 1
      %p110 = scmp.ne.s32.totalorder %s105, %s107
      %p111 = scmp.eq.s32.totalorder %s29, 0
      %p112 = por %p110, %p111
      %p113 = scmp.ne.s32.totalorder %s105, %s107
      %p114 = scmp.eq.s32.totalorder %s34, 1
      %p115 = por %p113, %p114
      %p116 = scmp.ne.s32.totalorder %s107, %s108
      %p117 = scmp.eq.s32.totalorder %s34, 0
      %p118 = por %p116, %p117
      %p119 = scmp.ne.s32.totalorder %s107, %s108
      %p120 = scmp.eq.s32.totalorder %s35, 1
      %p121 = por %p119, %p120
      %p123 = scmp.ne.s32.totalorder %s108, %s122
      %p124 = scmp.eq.s32.totalorder %s35, 0
      %p125 = por %p123, %p124
      %s127 = sadd.s32 %s126, 1
      %p130 = scmp.eq.s32.totalorder %s29, 1
      %p131 = scmp.ne.s32.totalorder %s126, %s128
      %p132 = scmp.eq.s32.totalorder %s29, 0
      %p133 = por %p131, %p132
      %p134 = scmp.ne.s32.totalorder %s126, %s128
      %p135 = scmp.eq.s32.totalorder %s34, 1
      %p136 = por %p134, %p135
      %p137 = scmp.ne.s32.totalorder %s128, %s129
      %p138 = scmp.eq.s32.totalorder %s34, 0
      %p139 = por %p137, %p138
      %p140 = scmp.ne.s32.totalorder %s128, %s129
      %p141 = scmp.eq.s32.totalorder %s35, 1
      %p142 = por %p140, %p141
      %p144 = scmp.ne.s32.totalorder %s129, %s143
      %p145 = scmp.eq.s32.totalorder %s35, 0
      %p146 = por %p144, %p145
      %s148 = sadd.s32 %s147, 1
      %p151 = scmp.eq.s32.totalorder %s29, 1
      %p152 = scmp.ne.s32.totalorder %s147, %s149
      %p153 = scmp.eq.s32.totalorder %s29, 0
      %p154 = por %p152, %p153
      %p155 = scmp.ne.s32.totalorder %s147, %s149
      %p156 = scmp.eq.s32.totalorder %s34, 1
      %p157 = por %p155, %p156
      %p158 = scmp.ne.s32.totalorder %s149, %s150
      %p159 = scmp.eq.s32.totalorder %s34, 0
      %p160 = por %p158, %p159
      %p161 = scmp.ne.s32.totalorder %s149, %s150
      %p162 = scmp.eq.s32.totalorder %s35, 1
      %p163 = por %p161, %p162
      %p165 = scmp.ne.s32.totalorder %s150, %s164
      %p166 = scmp.eq.s32.totalorder %s35, 0
      %p167 = por %p165, %p166
      %s169 = sadd.s32 %s168, 1
      %p172 = scmp.eq.s32.totalorder %s29, 1
      %p173 = scmp.ne.s32.totalorder %s168, %s170
      %p174 = scmp.eq.s32.totalorder %s29, 0
      %p175 = por %p173, %p174
      %p176 = scmp.ne.s32.totalorder %s168, %s170
      %p177 = scmp.eq.s32.totalorder %s34, 1
      %p178 = por %p176, %p177
      %p179 = scmp.ne.s32.totalorder %s170, %s171
      %p180 = scmp.eq.s32.totalorder %s34, 0
      %p181 = por %p179, %p180
      %p182 = scmp.ne.s32.totalorder %s170, %s171
      %p183 = scmp.eq.s32.totalorder %s35, 1
      %p184 = por %p182, %p183
      %p186 = scmp.ne.s32.totalorder %s171, %s185
      %p187 = scmp.eq.s32.totalorder %s35, 0
      %p188 = por %p186, %p187
      %s190 = sadd.s32 %s189, 1
      %p193 = scmp.eq.s32.totalorder %s29, 1
      %p194 = scmp.ne.s32.totalorder %s189, %s191
      %p195 = scmp.eq.s32.totalorder %s29, 0
      %p196 = por %p194, %p195
      %p197 = scmp.ne.s32.totalorder %s189, %s191
      %p198 = scmp.eq.s32.totalorder %s34, 1
      %p199 = por %p197, %p198
      %p200 = scmp.ne.s32.totalorder %s191, %s192
      %p201 = scmp.eq.s32.totalorder %s34, 0
      %p202 = por %p200, %p201
      %p203 = scmp.ne.s32.totalorder %s191, %s192
      %p204 = scmp.eq.s32.totalorder %s35, 1
      %p205 = por %p203, %p204
      %p207 = scmp.ne.s32.totalorder %s192, %s206
      %p208 = scmp.eq.s32.totalorder %s35, 0
      %p209 = por %p207, %p208
      %s211 = sadd.s32 %s210, 1
      %p214 = scmp.eq.s32.totalorder %s29, 1
      %p215 = scmp.ne.s32.totalorder %s210, %s212
      %p216 = scmp.eq.s32.totalorder %s29, 0
      %p217 = por %p215, %p216
      %p218 = scmp.ne.s32.totalorder %s210, %s212
      %p219 = scmp.eq.s32.totalorder %s34, 1
      %p220 = por %p218, %p219
      %p221 = scmp.ne.s32.totalorder %s212, %s213
      %p222 = scmp.eq.s32.totalorder %s34, 0
      %p223 = por %p221, %p222
      %p224 = scmp.ne.s32.totalorder %s212, %s213
      %p225 = scmp.eq.s32.totalorder %s35, 1
      %p226 = por %p224, %p225
      %p228 = scmp.ne.s32.totalorder %s213, %s227
      %p229 = scmp.eq.s32.totalorder %s35, 0
      %p230 = por %p228, %p229
      %s232 = sadd.s32 %s231, 1
      %p235 = scmp.eq.s32.totalorder %s29, 1
      %p236 = scmp.ne.s32.totalorder %s231, %s233
      %p237 = scmp.eq.s32.totalorder %s29, 0
      %p238 = por %p236, %p237
      %p239 = scmp.ne.s32.totalorder %s231, %s233
      %p240 = scmp.eq.s32.totalorder %s34, 1
      %p241 = por %p239, %p240
      %p242 = scmp.ne.s32.totalorder %s233, %s234
      %p243 = scmp.eq.s32.totalorder %s34, 0
      %p244 = por %p242, %p243
      %p245 = scmp.ne.s32.totalorder %s233, %s234
      %p246 = scmp.eq.s32.totalorder %s35, 1
      %p247 = por %p245, %p246
      %p249 = scmp.ne.s32.totalorder %s234, %s248
      %p250 = scmp.eq.s32.totalorder %s35, 0
      %p251 = por %p249, %p250
      %s253 = sadd.s32 %s252, 1
      %p256 = scmp.eq.s32.totalorder %s29, 1
      %p257 = scmp.ne.s32.totalorder %s252, %s254
      %p258 = scmp.eq.s32.totalorder %s29, 0
      %p259 = por %p257, %p258
      %p260 = scmp.ne.s32.totalorder %s252, %s254
      %p261 = scmp.eq.s32.totalorder %s34, 1
      %p262 = por %p260, %p261
      %p263 = scmp.ne.s32.totalorder %s254, %s255
      %p264 = scmp.eq.s32.totalorder %s34, 0
      %p265 = por %p263, %p264
      %p266 = scmp.ne.s32.totalorder %s254, %s255
      %p267 = scmp.eq.s32.totalorder %s35, 1
      %p268 = por %p266, %p267
      %p270 = scmp.ne.s32.totalorder %s255, %s269
      %p271 = scmp.eq.s32.totalorder %s35, 0
      %p272 = por %p270, %p271
      %s274 = sadd.s32 %s273, 1
      %p277 = scmp.eq.s32.totalorder %s29, 1
      %p278 = scmp.ne.s32.totalorder %s273, %s275
      %p279 = scmp.eq.s32.totalorder %s29, 0
      %p280 = por %p278, %p279
      %p281 = scmp.ne.s32.totalorder %s273, %s275
      %p282 = scmp.eq.s32.totalorder %s34, 1
      %p283 = por %p281, %p282
      %p284 = scmp.ne.s32.totalorder %s275, %s276
      %p285 = scmp.eq.s32.totalorder %s34, 0
      %p286 = por %p284, %p285
      %p287 = scmp.ne.s32.totalorder %s275, %s276
      %p288 = scmp.eq.s32.totalorder %s35, 1
      %p289 = por %p287, %p288
      %p291 = scmp.ne.s32.totalorder %s276, %s290
      %p292 = scmp.eq.s32.totalorder %s35, 0
      %p293 = por %p291, %p292
      %s295 = sadd.s32 %s294, 1
      %p298 = scmp.eq.s32.totalorder %s29, 1
      %p299 = scmp.ne.s32.totalorder %s294, %s296
      %p300 = scmp.eq.s32.totalorder %s29, 0
      %p301 = por %p299, %p300
      %p302 = scmp.ne.s32.totalorder %s294, %s296
      %p303 = scmp.eq.s32.totalorder %s34, 1
      %p304 = por %p302, %p303
      %p305 = scmp.ne.s32.totalorder %s296, %s297
      %p306 = scmp.eq.s32.totalorder %s34, 0
      %p307 = por %p305, %p306
      %p308 = scmp.ne.s32.totalorder %s296, %s297
      %p309 = scmp.eq.s32.totalorder %s35, 1
      %p310 = por %p308, %p309
      %p312 = scmp.ne.s32.totalorder %s297, %s311
      %p313 = scmp.eq.s32.totalorder %s35, 0
      %p314 = por %p312, %p313
      %s315 = ssub.s32 %s29, %s36
      %p316 = scmp.eq.s32.totalorder %s315, 0
      %s318 = sadd.s32 %s317, 1
      %s319 = scalar_select %p316, %s317, %s318
      %p322 = pneg %p316
      %p323 = scmp.eq.s32.totalorder %s29, 1
      %p324 = por %p322, %p323
      %p325 = scmp.ne.s32.totalorder %s317, %s320
      %p326 = scmp.eq.s32.totalorder %s29, 0
      %p327 = por %p325, %p326
      %p328 = scmp.ne.s32.totalorder %s317, %s320
      %p329 = scmp.eq.s32.totalorder %s34, 1
      %p330 = por %p328, %p329
      %p331 = scmp.ne.s32.totalorder %s320, %s321
      %p332 = scmp.eq.s32.totalorder %s34, 0
      %p333 = por %p331, %p332
      %p334 = scmp.ne.s32.totalorder %s320, %s321
      %p335 = scmp.eq.s32.totalorder %s35, 1
      %p336 = por %p334, %p335
      %p338 = scmp.ne.s32.totalorder %s321, %s337
      %p339 = scmp.eq.s32.totalorder %s35, 0
      %p340 = por %p338, %p339
      %p341 = scmp.le.s32.totalorder 1, %s29
      %p342 = scmp.lt.s32.totalorder %s29, 3
      %p343 = pnand %p341, %p342
      %p344 = pneg %p343
      // Predicated region
      $region9: #{tpu_custom_call.1} parent=5 // pred_check
        _
      $region10: #{tpu_custom_call.1} parent=5 // pred_check_branch
        %346 = sbr.rel (%p343) target = $region12
      $region11: #{tpu_custom_call.1} parent=5 // pred_region
        %s347 = ssub.s32 %s29, 1
        // Predicated region
        $region13: #{tpu_custom_call.1} parent=11 // pred_check
          %p348 = pneg %p76
        $region14: #{tpu_custom_call.1} parent=11 // pred_check_branch
          %350 = sbr.rel (%p348) target = $region16
        $region15: #{tpu_custom_call.1} parent=11 // pred_region
          %352 = vsyncadd [#allocation6], 0
          %s354 = sshll.u32 %s1, 4
          %s355 = int_to_ptr.hbm [resolvable:$true] %s354
          %s356 = sshll.u32 [#allocation5], 4
          %s357 = int_to_ptr.vmem [resolvable:$true] %s356
          %359 = dma.hbm_to_vmem [thread:$0]  %s355, 16, %s357, [#allocation6]
        $region16: #{tpu_custom_call.1} parent=11 // pred_fallthru
          _
        // Predicated region
        $region17: #{tpu_custom_call.1} parent=11 // pred_check
          %p360 = pneg %p97
        $region18: #{tpu_custom_call.1} parent=11 // pred_check_branch
          %362 = sbr.rel (%p360) target = $region20
        $region19: #{tpu_custom_call.1} parent=11 // pred_region
          _
        $region20: #{tpu_custom_call.1} parent=11 // pred_fallthru
          _
        // Predicated region
        $region21: #{tpu_custom_call.1} parent=11 // pred_check
          %p363 = pneg %p118
        $region22: #{tpu_custom_call.1} parent=11 // pred_check_branch
          %365 = sbr.rel (%p363) target = $region24
        $region23: #{tpu_custom_call.1} parent=11 // pred_region
          _
        $region24: #{tpu_custom_call.1} parent=11 // pred_fallthru
          _
        // Predicated region
        $region25: #{tpu_custom_call.1} parent=11 // pred_check
          %p366 = pneg %p139
        $region26: #{tpu_custom_call.1} parent=11 // pred_check_branch
          %368 = sbr.rel (%p366) target = $region28
        $region27: #{tpu_custom_call.1} parent=11 // pred_region
          _
        $region28: #{tpu_custom_call.1} parent=11 // pred_fallthru
          _
        // Predicated region
        $region29: #{tpu_custom_call.1} parent=11 // pred_check
          %p369 = pneg %p160
        $region30: #{tpu_custom_call.1} parent=11 // pred_check_branch
          %371 = sbr.rel (%p369) target = $region32
        $region31: #{tpu_custom_call.1} parent=11 // pred_region
          _
        $region32: #{tpu_custom_call.1} parent=11 // pred_fallthru
          _
        // Predicated region
        $region33: #{tpu_custom_call.1} parent=11 // pred_check
          %p372 = pneg %p181
        $region34: #{tpu_custom_call.1} parent=11 // pred_check_branch
          %374 = sbr.rel (%p372) target = $region36
        $region35: #{tpu_custom_call.1} parent=11 // pred_region
          _
        $region36: #{tpu_custom_call.1} parent=11 // pred_fallthru
          _
        // Predicated region
        $region37: #{tpu_custom_call.1} parent=11 // pred_check
          %p375 = pneg %p202
        $region38: #{tpu_custom_call.1} parent=11 // pred_check_branch
          %377 = sbr.rel (%p375) target = $region40
        $region39: #{tpu_custom_call.1} parent=11 // pred_region
          %379 = vsyncadd [#allocation6], 0
          %s380 = sshll.u32 %s7, 4
          %s381 = int_to_ptr.hbm [resolvable:$true] %s380
          %s382 = sshll.u32 [#allocation7], 4
          %s383 = int_to_ptr.vmem [resolvable:$true] %s382
          %388 = dma.hbm_to_vmem [thread:$0]  %s381, 1024, %s383, [#allocation6], 64, 64, 4
        $region40: #{tpu_custom_call.1} parent=11 // pred_fallthru
          _
        // Predicated region
        $region41: #{tpu_custom_call.1} parent=11 // pred_check
          %p389 = pneg %p223
        $region42: #{tpu_custom_call.1} parent=11 // pred_check_branch
          %391 = sbr.rel (%p389) target = $region44
        $region43: #{tpu_custom_call.1} parent=11 // pred_region
          %393 = vsyncadd [#allocation9], 0
          %s394 = sshll.u32 %s8, 4
          %s395 = int_to_ptr.hbm [resolvable:$true] %s394
          %s396 = sshll.u32 [#allocation8], 4
          %s397 = int_to_ptr.vmem [resolvable:$true] %s396
          %402 = dma.hbm_to_vmem [thread:$0]  %s395, 3072, %s397, [#allocation9], 192, 192, 12
        $region44: #{tpu_custom_call.1} parent=11 // pred_fallthru
          _
        // Predicated region
        $region45: #{tpu_custom_call.1} parent=11 // pred_check
          %p403 = pneg %p244
        $region46: #{tpu_custom_call.1} parent=11 // pred_check_branch
          %405 = sbr.rel (%p403) target = $region48
        $region47: #{tpu_custom_call.1} parent=11 // pred_region
          %407 = vsyncadd [#allocation9], 0
          %s408 = sshll.u32 %s9, 4
          %s409 = int_to_ptr.hbm [resolvable:$true] %s408
          %s410 = sshll.u32 [#allocation10], 4
          %s411 = int_to_ptr.vmem [resolvable:$true] %s410
          %416 = dma.hbm_to_vmem [thread:$0]  %s409, 4096, %s411, [#allocation9], 256, 256, 16
        $region48: #{tpu_custom_call.1} parent=11 // pred_fallthru
          _
        // Predicated region
        $region49: #{tpu_custom_call.1} parent=11 // pred_check
          %p417 = pneg %p265
        $region50: #{tpu_custom_call.1} parent=11 // pred_check_branch
          %419 = sbr.rel (%p417) target = $region52
        $region51: #{tpu_custom_call.1} parent=11 // pred_region
          %421 = vsyncadd [#allocation12], 0
          %s422 = sshll.u32 %s10, 4
          %s423 = int_to_ptr.hbm [resolvable:$true] %s422
          %s424 = sshll.u32 [#allocation11], 4
          %s425 = int_to_ptr.vmem [resolvable:$true] %s424
          %430 = dma.hbm_to_vmem [thread:$0]  %s423, 4096, %s425, [#allocation12], 256, 256, 16
        $region52: #{tpu_custom_call.1} parent=11 // pred_fallthru
          _
        // Predicated region
        $region53: #{tpu_custom_call.1} parent=11 // pred_check
          %p431 = pneg %p286
        $region54: #{tpu_custom_call.1} parent=11 // pred_check_branch
          %433 = sbr.rel (%p431) target = $region56
        $region55: #{tpu_custom_call.1} parent=11 // pred_region
          %435 = vsyncadd [#allocation12], 0
          %s436 = sshll.u32 %s11, 4
          %s437 = int_to_ptr.hbm [resolvable:$true] %s436
          %s438 = sshll.u32 [#allocation13], 4
          %s439 = int_to_ptr.vmem [resolvable:$true] %s438
          %444 = dma.hbm_to_vmem [thread:$0]  %s437, 256, %s439, [#allocation12], 128, 128, 8
        $region56: #{tpu_custom_call.1} parent=11 // pred_fallthru
          _
        // Predicated region
        $region57: #{tpu_custom_call.1} parent=11 // pred_check
          %p445 = pneg %p307
        $region58: #{tpu_custom_call.1} parent=11 // pred_check_branch
          %447 = sbr.rel (%p445) target = $region60
        $region59: #{tpu_custom_call.1} parent=11 // pred_region
          %449 = vsyncadd [#allocation15], 0
          %s450 = sshll.u32 %s12, 4
          %s451 = int_to_ptr.hbm [resolvable:$true] %s450
          %s452 = sshll.u32 [#allocation14], 4
          %s453 = int_to_ptr.vmem [resolvable:$true] %s452
          %458 = dma.hbm_to_vmem [thread:$0]  %s451, 256, %s453, [#allocation15], 128, 128, 8
        $region60: #{tpu_custom_call.1} parent=11 // pred_fallthru
          _
      $region12: #{tpu_custom_call.1} parent=5 // pred_fallthru
        _
      %p459 = scmp.lt.s32.totalorder %s29, 2
      // Predicated region
      $region61: #{tpu_custom_call.1} parent=5 // pred_check
        %p460 = pneg %p459
      $region62: #{tpu_custom_call.1} parent=5 // pred_check_branch
        %462 = sbr.rel (%p460) target = $region64
      $region63: #{tpu_custom_call.1} parent=5 // pred_region
        // Predicated region
        $region65: #{tpu_custom_call.1} parent=63 // pred_check
          %p463 = pneg %p49
        $region66: #{tpu_custom_call.1} parent=63 // pred_check_branch
          %465 = sbr.rel (%p463) target = $region68
        $region67: #{tpu_custom_call.1} parent=63 // pred_region
          %s466 = sand.u32 %s39, 1
          %s467 = scalar_lea.sflag [#allocation3], %s466
          %s468 = sand.u32 %s39, 1
          %s469 = smul.addr %s468, 16
          %s470 = scalar_lea.vmem [#allocation2], %s469
          %s471 = smul.u32 2, %s29
          %473 = vsyncadd %s467, 0
          %s474 = smul.addr %s471, 8
          %s475 = scalar_lea.hbm %s0, %s474
          %s476 = sshll.u32 %s475, 4
          %s477 = int_to_ptr.hbm [resolvable:$true] %s476
          %s478 = sshll.u32 %s470, 4
          %s479 = int_to_ptr.vmem [resolvable:$true] %s478
          %484 = dma.hbm_to_vmem [thread:$0]  %s477, 256, %s479, %s467, 128, 128, 8
        $region68: #{tpu_custom_call.1} parent=63 // pred_fallthru
          _
      $region64: #{tpu_custom_call.1} parent=5 // pred_fallthru
        _
      %p485 = scmp.le.s32.totalorder 1, %s29
      %p486 = scmp.lt.s32.totalorder %s29, 3
      %p487 = pnand %p485, %p486
      %p488 = pneg %p487
      // Predicated region
      $region69: #{tpu_custom_call.1} parent=5 // pred_check
        _
      $region70: #{tpu_custom_call.1} parent=5 // pred_check_branch
        %490 = sbr.rel (%p487) target = $region72
      $region71: #{tpu_custom_call.1} parent=5 // pred_region
        %s491 = ssub.s32 %s29, 1
        %s492 = sand.u32 %s42, 1
        %s493 = scalar_lea.sflag [#allocation3], %s492
        %s494 = sand.u32 %s42, 1
        %s495 = smul.addr %s494, 16
        %s496 = scalar_lea.vmem [#allocation2], %s495
        // Predicated region
        $region73: #{tpu_custom_call.1} parent=71 // pred_check
          %p497 = pneg %p55
        $region74: #{tpu_custom_call.1} parent=71 // pred_check_branch
          %499 = sbr.rel (%p497) target = $region76
        $region75: #{tpu_custom_call.1} parent=71 // pred_region
          %501 = dma.done %s493, 256
        $region76: #{tpu_custom_call.1} parent=71 // pred_fallthru
          _
        // Predicated region
        $region77: #{tpu_custom_call.1} parent=71 // pred_check
          %p502 = pneg %p76
        $region78: #{tpu_custom_call.1} parent=71 // pred_check_branch
          %504 = sbr.rel (%p502) target = $region80
        $region79: #{tpu_custom_call.1} parent=71 // pred_region
          %506 = dma.done [#allocation6], 16
        $region80: #{tpu_custom_call.1} parent=71 // pred_fallthru
          _
        // Predicated region
        $region81: #{tpu_custom_call.1} parent=71 // pred_check
          %p507 = pneg %p202
        $region82: #{tpu_custom_call.1} parent=71 // pred_check_branch
          %509 = sbr.rel (%p507) target = $region84
        $region83: #{tpu_custom_call.1} parent=71 // pred_region
          %511 = dma.done [#allocation6], 1024
        $region84: #{tpu_custom_call.1} parent=71 // pred_fallthru
          _
        // Predicated region
        $region85: #{tpu_custom_call.1} parent=71 // pred_check
          %p512 = pneg %p223
        $region86: #{tpu_custom_call.1} parent=71 // pred_check_branch
          %514 = sbr.rel (%p512) target = $region88
        $region87: #{tpu_custom_call.1} parent=71 // pred_region
          %516 = dma.done [#allocation9], 3072
        $region88: #{tpu_custom_call.1} parent=71 // pred_fallthru
          _
        // Predicated region
        $region89: #{tpu_custom_call.1} parent=71 // pred_check
          %p517 = pneg %p244
        $region90: #{tpu_custom_call.1} parent=71 // pred_check_branch
          %519 = sbr.rel (%p517) target = $region92
        $region91: #{tpu_custom_call.1} parent=71 // pred_region
          %521 = dma.done [#allocation9], 4096
        $region92: #{tpu_custom_call.1} parent=71 // pred_fallthru
          _
        // Predicated region
        $region93: #{tpu_custom_call.1} parent=71 // pred_check
          %p522 = pneg %p265
        $region94: #{tpu_custom_call.1} parent=71 // pred_check_branch
          %524 = sbr.rel (%p522) target = $region96
        $region95: #{tpu_custom_call.1} parent=71 // pred_region
          %526 = dma.done [#allocation12], 4096
        $region96: #{tpu_custom_call.1} parent=71 // pred_fallthru
          _
        // Predicated region
        $region97: #{tpu_custom_call.1} parent=71 // pred_check
          %p527 = pneg %p286
        $region98: #{tpu_custom_call.1} parent=71 // pred_check_branch
          %529 = sbr.rel (%p527) target = $region100
        $region99: #{tpu_custom_call.1} parent=71 // pred_region
          %531 = dma.done [#allocation12], 256
        $region100: #{tpu_custom_call.1} parent=71 // pred_fallthru
          _
        // Predicated region
        $region101: #{tpu_custom_call.1} parent=71 // pred_check
          %p532 = pneg %p307
        $region102: #{tpu_custom_call.1} parent=71 // pred_check_branch
          %534 = sbr.rel (%p532) target = $region104
        $region103: #{tpu_custom_call.1} parent=71 // pred_region
          %536 = dma.done [#allocation15], 256
        $region104: #{tpu_custom_call.1} parent=71 // pred_fallthru
          _
        %s537 = sand.u32 %s42, 1
        %s538 = scalar_lea.sflag [#allocation3], %s537
        %s539 = sand.u32 %s42, 1
        %s540 = smul.addr %s539, 16
        %s541 = scalar_lea.vmem [#allocation2], %s540
        %p542 = pneg %p55
        %p543 = pneg %p52
        %p544 = pneg %p76
        %p545 = pneg %p73
        %p546 = pneg %p97
        %p547 = pneg %p94
        %p548 = pneg %p118
        %p549 = pneg %p115
        %p550 = pneg %p139
        %p551 = pneg %p136
        %p552 = pneg %p160
        %p553 = pneg %p157
        %p554 = pneg %p181
        %p555 = pneg %p178
        %p556 = pneg %p202
        %p557 = pneg %p199
        %p558 = pneg %p223
        %p559 = pneg %p220
        %p560 = pneg %p244
        %p561 = pneg %p241
        %p562 = pneg %p265
        %p563 = pneg %p262
        %p564 = pneg %p286
        %p565 = pneg %p283
        %p566 = pneg %p307
        %p567 = pneg %p304
        %p568 = pneg %p333
        %p569 = pneg %p330
        %s570 = sand.u32 %s320, 1
        %s571 = scalar_lea.sflag [#allocation4], %s570
        %s572 = sand.u32 %s320, 1
        %s573 = smul.addr %s572, 64
        %s574 = scalar_lea.vmem [#allocation16], %s573
        %s575 = smul.u32 2, %s34
        %s576 = smul.u32 2, %s34
        %v577 = vld [vmem:[%s496] sm:$0xff]
        %v578 = vld [vmem:[%s496 + $0x8] sm:$0xff]
        %v579 = vld [vmem:[#allocation5] sm:$0x1]
        %v581 = vperm.slane %v579, 0
        %v583 = vmul.f32 %v577, %v581
        %v584 = vmul.f32 %v578, %v581
        %v585 = vld [vmem:[%s2] sm:$0x1]
        %v587 = vperm.slane %v585, 0
        %v589 = vadd.f32 %v583, %v587
        %v590 = vadd.f32 %v584, %v587
        %v591 = vmax.f32 %v589, 0.0
        %v592 = vmax.f32 %v590, 0.0
        %v593 = vpack.c.bf16 %v592, %v591
        %v594 = vld [vmem:[#allocation7] sm:$0xf]
        %v595 = vld [vmem:[#allocation7 + $0x4] sm:$0xf]
        %v596 = vld [vmem:[#allocation7 + $0x8] sm:$0xf]
        %v597 = vld [vmem:[#allocation7 + $0xc] sm:$0xf]
        %v598 = vld [vmem:[#allocation7 + $0x10] sm:$0xf]
        %v599 = vld [vmem:[#allocation7 + $0x14] sm:$0xf]
        %v600 = vld [vmem:[#allocation7 + $0x18] sm:$0xf]
        %v601 = vld [vmem:[#allocation7 + $0x1c] sm:$0xf]
        %v602 = vld [vmem:[#allocation7 + $0x20] sm:$0xf]
        %v603 = vld [vmem:[#allocation7 + $0x24] sm:$0xf]
        %v604 = vld [vmem:[#allocation7 + $0x28] sm:$0xf]
        %v605 = vld [vmem:[#allocation7 + $0x2c] sm:$0xf]
        %v606 = vld [vmem:[#allocation7 + $0x30] sm:$0xf]
        %v607 = vld [vmem:[#allocation7 + $0x34] sm:$0xf]
        %v608 = vld [vmem:[#allocation7 + $0x38] sm:$0xf]
        %v609 = vld [vmem:[#allocation7 + $0x3c] sm:$0xf]
        %v626 = vunpack.c.l.b16 %v594
        %v627 = vunpack.c.l.b16 %v595
        %v628 = vunpack.c.l.b16 %v596
        %v629 = vunpack.c.l.b16 %v597
        %v630 = vunpack.c.l.b16 %v598
        %v631 = vunpack.c.l.b16 %v599
        %v632 = vunpack.c.l.b16 %v600
        %v633 = vunpack.c.l.b16 %v601
        %v634 = vunpack.c.l.b16 %v602
        %v635 = vunpack.c.l.b16 %v603
        %v636 = vunpack.c.l.b16 %v604
        %v637 = vunpack.c.l.b16 %v605
        %v638 = vunpack.c.l.b16 %v606
        %v639 = vunpack.c.l.b16 %v607
        %v640 = vunpack.c.l.b16 %v608
        %v641 = vunpack.c.l.b16 %v609
        %v642 = vpack.c.b16 %v627, %v626
        %v643 = vpack.c.b16 %v629, %v628
        %v644 = vpack.c.b16 %v631, %v630
        %v645 = vpack.c.b16 %v633, %v632
        %v646 = vpack.c.b16 %v635, %v634
        %v647 = vpack.c.b16 %v637, %v636
        %v648 = vpack.c.b16 %v639, %v638
        %v649 = vpack.c.b16 %v641, %v640
        %658 = vmatpush.bf16.msra.mxu0 %v649
        %659 = vmatpush.bf16.msra.mxu0 %v648
        %660 = vmatpush.bf16.msra.mxu0 %v647
        %661 = vmatpush.bf16.msra.mxu0 %v646
        %662 = vmatpush.bf16.msra.mxu0 %v645
        %663 = vmatpush.bf16.msra.mxu0 %v644
        %664 = vmatpush.bf16.msra.mxu0 %v643
        %665 = vmatpush.bf16.msra.mxu0 %v642
        %666 = vmatmul.bf16.gmra.mxu0 %v593
        %v667 = vpop.f32.mrf.mxu0
        %v668 = vadd.f32 0.0, %v667
        %v669 = vpop.f32.mrf.mxu0
        %v670 = vadd.f32 0.0, %v669
        %671 = vdwg.mxu0
        %v672 = vld [vmem:[%s3] sm:$0x1]
        %v674 = vperm.slane %v672, 0
        %v676 = vmul.f32 %v668, %v674
        %v677 = vmul.f32 %v670, %v674
        %v678 = vld [vmem:[%s4] sm:$0x1]
        %v680 = vperm.slane %v678, 0
        %v682 = vadd.f32 %v676, %v680
        %v683 = vadd.f32 %v677, %v680
        %v684 = vmax.f32 %v682, 0.0
        %v685 = vmax.f32 %v683, 0.0
        %v686 = vpack.c.bf16 %v685, %v684
        %v687 = vld [vmem:[#allocation8] sm:$0xff]
        %v688 = vld [vmem:[#allocation8 + $0x8] sm:$0xf]
        %v689 = vld [vmem:[#allocation8 + $0xc] sm:$0xff]
        %v690 = vld [vmem:[#allocation8 + $0x14] sm:$0xf]
        %v691 = vld [vmem:[#allocation8 + $0x18] sm:$0xff]
        %v692 = vld [vmem:[#allocation8 + $0x20] sm:$0xf]
        %v693 = vld [vmem:[#allocation8 + $0x24] sm:$0xff]
        %v694 = vld [vmem:[#allocation8 + $0x2c] sm:$0xf]
        %v695 = vld [vmem:[#allocation8 + $0x30] sm:$0xff]
        %v696 = vld [vmem:[#allocation8 + $0x38] sm:$0xf]
        %v697 = vld [vmem:[#allocation8 + $0x3c] sm:$0xff]
        %v698 = vld [vmem:[#allocation8 + $0x44] sm:$0xf]
        %v699 = vld [vmem:[#allocation8 + $0x48] sm:$0xff]
        %v700 = vld [vmem:[#allocation8 + $0x50] sm:$0xf]
        %v701 = vld [vmem:[#allocation8 + $0x54] sm:$0xff]
        %v702 = vld [vmem:[#allocation8 + $0x5c] sm:$0xf]
        %v703 = vld [vmem:[#allocation8 + $0x60] sm:$0xff]
        %v704 = vld [vmem:[#allocation8 + $0x68] sm:$0xf]
        %v705 = vld [vmem:[#allocation8 + $0x6c] sm:$0xff]
        %v706 = vld [vmem:[#allocation8 + $0x74] sm:$0xf]
        %v707 = vld [vmem:[#allocation8 + $0x78] sm:$0xff]
        %v708 = vld [vmem:[#allocation8 + $0x80] sm:$0xf]
        %v709 = vld [vmem:[#allocation8 + $0x84] sm:$0xff]
        %v710 = vld [vmem:[#allocation8 + $0x8c] sm:$0xf]
        %v711 = vld [vmem:[#allocation8 + $0x90] sm:$0xff]
        %v712 = vld [vmem:[#allocation8 + $0x98] sm:$0xf]
        %v713 = vld [vmem:[#allocation8 + $0x9c] sm:$0xff]
        %v714 = vld [vmem:[#allocation8 + $0xa4] sm:$0xf]
        %v715 = vld [vmem:[#allocation8 + $0xa8] sm:$0xff]
        %v716 = vld [vmem:[#allocation8 + $0xb0] sm:$0xf]
        %v717 = vld [vmem:[#allocation8 + $0xb4] sm:$0xff]
        %v718 = vld [vmem:[#allocation8 + $0xbc] sm:$0xf]
        %v751 = vunpack.c.l.b16 %v687
        %v752 = vunpack.c.h.b16 %v687
        %v753 = vunpack.c.l.b16 %v688
        %v754 = vunpack.c.l.b16 %v689
        %v755 = vunpack.c.h.b16 %v689
        %v756 = vunpack.c.l.b16 %v690
        %v757 = vunpack.c.l.b16 %v691
        %v758 = vunpack.c.h.b16 %v691
        %v759 = vunpack.c.l.b16 %v692
        %v760 = vunpack.c.l.b16 %v693
        %v761 = vunpack.c.h.b16 %v693
        %v762 = vunpack.c.l.b16 %v694
        %v763 = vunpack.c.l.b16 %v695
        %v764 = vunpack.c.h.b16 %v695
        %v765 = vunpack.c.l.b16 %v696
        %v766 = vunpack.c.l.b16 %v697
        %v767 = vunpack.c.h.b16 %v697
        %v768 = vunpack.c.l.b16 %v698
        %v769 = vunpack.c.l.b16 %v699
        %v770 = vunpack.c.h.b16 %v699
        %v771 = vunpack.c.l.b16 %v700
        %v772 = vunpack.c.l.b16 %v701
        %v773 = vunpack.c.h.b16 %v701
        %v774 = vunpack.c.l.b16 %v702
        %v775 = vunpack.c.l.b16 %v703
        %v776 = vunpack.c.h.b16 %v703
        %v777 = vunpack.c.l.b16 %v704
        %v778 = vunpack.c.l.b16 %v705
        %v779 = vunpack.c.h.b16 %v705
        %v780 = vunpack.c.l.b16 %v706
        %v781 = vunpack.c.l.b16 %v707
        %v782 = vunpack.c.h.b16 %v707
        %v783 = vunpack.c.l.b16 %v708
        %v784 = vunpack.c.l.b16 %v709
        %v785 = vunpack.c.h.b16 %v709
        %v786 = vunpack.c.l.b16 %v710
        %v787 = vunpack.c.l.b16 %v711
        %v788 = vunpack.c.h.b16 %v711
        %v789 = vunpack.c.l.b16 %v712
        %v790 = vunpack.c.l.b16 %v713
        %v791 = vunpack.c.h.b16 %v713
        %v792 = vunpack.c.l.b16 %v714
        %v793 = vunpack.c.l.b16 %v715
        %v794 = vunpack.c.h.b16 %v715
        %v795 = vunpack.c.l.b16 %v716
        %v796 = vunpack.c.l.b16 %v717
        %v797 = vunpack.c.h.b16 %v717
        %v798 = vunpack.c.l.b16 %v718
        %v799 = vpack.c.b16 %v754, %v751
        %v800 = vpack.c.b16 %v755, %v752
        %v801 = vpack.c.b16 %v756, %v753
        %v802 = vpack.c.b16 %v760, %v757
        %v803 = vpack.c.b16 %v761, %v758
        %v804 = vpack.c.b16 %v762, %v759
        %v805 = vpack.c.b16 %v766, %v763
        %v806 = vpack.c.b16 %v767, %v764
        %v807 = vpack.c.b16 %v768, %v765
        %v808 = vpack.c.b16 %v772, %v769
        %v809 = vpack.c.b16 %v773, %v770
        %v810 = vpack.c.b16 %v774, %v771
        %v811 = vpack.c.b16 %v778, %v775
        %v812 = vpack.c.b16 %v779, %v776
        %v813 = vpack.c.b16 %v780, %v777
        %v814 = vpack.c.b16 %v784, %v781
        %v815 = vpack.c.b16 %v785, %v782
        %v816 = vpack.c.b16 %v786, %v783
        %v817 = vpack.c.b16 %v790, %v787
        %v818 = vpack.c.b16 %v791, %v788
        %v819 = vpack.c.b16 %v792, %v789
        %v820 = vpack.c.b16 %v796, %v793
        %v821 = vpack.c.b16 %v797, %v794
        %v822 = vpack.c.b16 %v798, %v795
        %847 = vmatpush.bf16.msra.mxu0 %v820
        %848 = vmatpush.bf16.msra.mxu0 %v817
        %849 = vmatpush.bf16.msra.mxu0 %v814
        %850 = vmatpush.bf16.msra.mxu0 %v811
        %851 = vmatpush.bf16.msra.mxu0 %v808
        %852 = vmatpush.bf16.msra.mxu0 %v805
        %853 = vmatpush.bf16.msra.mxu0 %v802
        %854 = vmatpush.bf16.msra.mxu0 %v799
        %855 = vmatmul.bf16.gmra.mxu0 %v686
        %v856 = vpop.f32.mrf.mxu0
        %v857 = vadd.f32 0.0, %v856
        %v858 = vpop.f32.mrf.mxu0
        %v859 = vadd.f32 0.0, %v858
        %860 = vdwg.mxu0
        %861 = vmatpush.bf16.msra.mxu0 %v821
        %862 = vmatpush.bf16.msra.mxu0 %v818
        %863 = vmatpush.bf16.msra.mxu0 %v815
        %864 = vmatpush.bf16.msra.mxu0 %v812
        %865 = vmatpush.bf16.msra.mxu0 %v809
        %866 = vmatpush.bf16.msra.mxu0 %v806
        %867 = vmatpush.bf16.msra.mxu0 %v803
        %868 = vmatpush.bf16.msra.mxu0 %v800
        %869 = vmatmul.bf16.gmra.mxu0 %v686
        %v870 = vpop.f32.mrf.mxu0
        %v871 = vadd.f32 0.0, %v870
        %v872 = vpop.f32.mrf.mxu0
        %v873 = vadd.f32 0.0, %v872
        %874 = vdwg.mxu0
        %875 = vmatpush.bf16.msra.mxu0 %v822
        %876 = vmatpush.bf16.msra.mxu0 %v819
        %877 = vmatpush.bf16.msra.mxu0 %v816
        %878 = vmatpush.bf16.msra.mxu0 %v813
        %879 = vmatpush.bf16.msra.mxu0 %v810
        %880 = vmatpush.bf16.msra.mxu0 %v807
        %881 = vmatpush.bf16.msra.mxu0 %v804
        %882 = vmatpush.bf16.msra.mxu0 %v801
        %883 = vmatmul.bf16.gmra.mxu0 %v686
        %v884 = vpop.f32.mrf.mxu0
        %v885 = vadd.f32 0.0, %v884
        %v886 = vpop.f32.mrf.mxu0
        %v887 = vadd.f32 0.0, %v886
        %888 = vdwg.mxu0
        %v889 = vld [vmem:[#allocation13] sm:$0xff]
        %v890 = vld [vmem:[#allocation13 + $0x8] sm:$0xff]
        %vm891 = vcmask 130048
        %v893 = vsel %vm891, %v889, 0
        %v896 = vsel %vm891, %v890, 0
        %898 = vmatpush.msra.mxu0 0.0
        %899 = vmatpush.msra.mxu0 0.0
        %900 = vmatpush.msra.mxu0 0.0
        %901 = vmatpush.msra.mxu0 0.0
        %902 = vmatpush.msra.mxu0 0.0
        %903 = vmatpush.msra.mxu0 0.0
        %904 = vmatpush.msra.mxu0 0.0
        %905 = vmatpush.msra.mxu0 0.0
        %906 = vmatpush.msra.mxu0 0.0
        %907 = vmatpush.msra.mxu0 0.0
        %908 = vmatpush.msra.mxu0 0.0
        %909 = vmatpush.msra.mxu0 0.0
        %910 = vmatpush.msra.mxu0 0.0
        %911 = vmatpush.msra.mxu0 0.0
        %912 = vmatpush.msra.mxu0 %v859
        %913 = vmatpush.msra.mxu0 %v857
        %914 = vmatmul.f32.gmra.mxu0 %v893
        %v915 = vpop.f32.mrf.mxu0
        %v916 = vadd.f32 0.0, %v915
        %917 = vmatmul.f32.gmra.mxu0 %v896
        %v918 = vpop.f32.mrf.mxu0
        %v919 = vadd.f32 0.0, %v918
        %920 = vdwg.mxu0
        %v921 = vadd.f32 %v871, %v916
        %v922 = vadd.f32 %v873, %v919
        %v923 = vld [vmem:[#allocation14] sm:$0xff]
        %v924 = vld [vmem:[#allocation14 + $0x8] sm:$0xff]
        %v926 = vsel %vm891, %v923, 0
        %v929 = vsel %vm891, %v924, 0
        %931 = vmatpush.msra.mxu0 0.0
        %932 = vmatpush.msra.mxu0 0.0
        %933 = vmatpush.msra.mxu0 0.0
        %934 = vmatpush.msra.mxu0 0.0
        %935 = vmatpush.msra.mxu0 0.0
        %936 = vmatpush.msra.mxu0 0.0
        %937 = vmatpush.msra.mxu0 0.0
        %938 = vmatpush.msra.mxu0 0.0
        %939 = vmatpush.msra.mxu0 0.0
        %940 = vmatpush.msra.mxu0 0.0
        %941 = vmatpush.msra.mxu0 0.0
        %942 = vmatpush.msra.mxu0 0.0
        %943 = vmatpush.msra.mxu0 0.0
        %944 = vmatpush.msra.mxu0 0.0
        %945 = vmatpush.msra.mxu0 %v887
        %946 = vmatpush.msra.mxu0 %v885
        %947 = vmatmul.f32.gmra.mxu0 %v926
        %v948 = vpop.f32.mrf.mxu0
        %v949 = vadd.f32 0.0, %v948
        %950 = vmatmul.f32.gmra.mxu0 %v929
        %v951 = vpop.f32.mrf.mxu0
        %v952 = vadd.f32 0.0, %v951
        %953 = vdwg.mxu0
        %v954 = vadd.f32 %v921, %v949
        %v955 = vadd.f32 %v922, %v952
        %v956 = vld [vmem:[%s5] sm:$0x1]
        %v958 = vperm.slane %v956, 0
        %v960 = vmul.f32 %v954, %v958
        %v961 = vmul.f32 %v955, %v958
        %v962 = vld [vmem:[%s6] sm:$0x1]
        %v964 = vperm.slane %v962, 0
        %v966 = vadd.f32 %v960, %v964
        %v967 = vadd.f32 %v961, %v964
        %v968 = vmax.f32 %v966, 0.0
        %v969 = vmax.f32 %v967, 0.0
        %v970 = vpack.c.bf16 %v969, %v968
        %v971 = vld [vmem:[#allocation10] sm:$0xff]
        %v972 = vld [vmem:[#allocation10 + $0x8] sm:$0xff]
        %v973 = vld [vmem:[#allocation10 + $0x10] sm:$0xff]
        %v974 = vld [vmem:[#allocation10 + $0x18] sm:$0xff]
        %v975 = vld [vmem:[#allocation10 + $0x20] sm:$0xff]
        %v976 = vld [vmem:[#allocation10 + $0x28] sm:$0xff]
        %v977 = vld [vmem:[#allocation10 + $0x30] sm:$0xff]
        %v978 = vld [vmem:[#allocation10 + $0x38] sm:$0xff]
        %v979 = vld [vmem:[#allocation10 + $0x40] sm:$0xff]
        %v980 = vld [vmem:[#allocation10 + $0x48] sm:$0xff]
        %v981 = vld [vmem:[#allocation10 + $0x50] sm:$0xff]
        %v982 = vld [vmem:[#allocation10 + $0x58] sm:$0xff]
        %v983 = vld [vmem:[#allocation10 + $0x60] sm:$0xff]
        %v984 = vld [vmem:[#allocation10 + $0x68] sm:$0xff]
        %v985 = vld [vmem:[#allocation10 + $0x70] sm:$0xff]
        %v986 = vld [vmem:[#allocation10 + $0x78] sm:$0xff]
        %v987 = vld [vmem:[#allocation10 + $0x80] sm:$0xff]
        %v988 = vld [vmem:[#allocation10 + $0x88] sm:$0xff]
        %v989 = vld [vmem:[#allocation10 + $0x90] sm:$0xff]
        %v990 = vld [vmem:[#allocation10 + $0x98] sm:$0xff]
        %v991 = vld [vmem:[#allocation10 + $0xa0] sm:$0xff]
        %v992 = vld [vmem:[#allocation10 + $0xa8] sm:$0xff]
        %v993 = vld [vmem:[#allocation10 + $0xb0] sm:$0xff]
        %v994 = vld [vmem:[#allocation10 + $0xb8] sm:$0xff]
        %v995 = vld [vmem:[#allocation10 + $0xc0] sm:$0xff]
        %v996 = vld [vmem:[#allocation10 + $0xc8] sm:$0xff]
        %v997 = vld [vmem:[#allocation10 + $0xd0] sm:$0xff]
        %v998 = vld [vmem:[#allocation10 + $0xd8] sm:$0xff]
        %v999 = vld [vmem:[#allocation10 + $0xe0] sm:$0xff]
        %v1000 = vld [vmem:[#allocation10 + $0xe8] sm:$0xff]
        %v1001 = vld [vmem:[#allocation10 + $0xf0] sm:$0xff]
        %v1002 = vld [vmem:[#allocation10 + $0xf8] sm:$0xff]
        %v1003 = vld [vmem:[#allocation11] sm:$0xff]
        %v1004 = vld [vmem:[#allocation11 + $0x8] sm:$0xff]
        %v1005 = vld [vmem:[#allocation11 + $0x10] sm:$0xff]
        %v1006 = vld [vmem:[#allocation11 + $0x18] sm:$0xff]
        %v1007 = vld [vmem:[#allocation11 + $0x20] sm:$0xff]
        %v1008 = vld [vmem:[#allocation11 + $0x28] sm:$0xff]
        %v1009 = vld [vmem:[#allocation11 + $0x30] sm:$0xff]
        %v1010 = vld [vmem:[#allocation11 + $0x38] sm:$0xff]
        %v1011 = vld [vmem:[#allocation11 + $0x40] sm:$0xff]
        %v1012 = vld [vmem:[#allocation11 + $0x48] sm:$0xff]
        %v1013 = vld [vmem:[#allocation11 + $0x50] sm:$0xff]
        %v1014 = vld [vmem:[#allocation11 + $0x58] sm:$0xff]
        %v1015 = vld [vmem:[#allocation11 + $0x60] sm:$0xff]
        %v1016 = vld [vmem:[#allocation11 + $0x68] sm:$0xff]
        %v1017 = vld [vmem:[#allocation11 + $0x70] sm:$0xff]
        %v1018 = vld [vmem:[#allocation11 + $0x78] sm:$0xff]
        %v1019 = vld [vmem:[#allocation11 + $0x80] sm:$0xff]
        %v1020 = vld [vmem:[#allocation11 + $0x88] sm:$0xff]
        %v1021 = vld [vmem:[#allocation11 + $0x90] sm:$0xff]
        %v1022 = vld [vmem:[#allocation11 + $0x98] sm:$0xff]
        %v1023 = vld [vmem:[#allocation11 + $0xa0] sm:$0xff]
        %v1024 = vld [vmem:[#allocation11 + $0xa8] sm:$0xff]
        %v1025 = vld [vmem:[#allocation11 + $0xb0] sm:$0xff]
        %v1026 = vld [vmem:[#allocation11 + $0xb8] sm:$0xff]
        %v1027 = vld [vmem:[#allocation11 + $0xc0] sm:$0xff]
        %v1028 = vld [vmem:[#allocation11 + $0xc8] sm:$0xff]
        %v1029 = vld [vmem:[#allocation11 + $0xd0] sm:$0xff]
        %v1030 = vld [vmem:[#allocation11 + $0xd8] sm:$0xff]
        %v1031 = vld [vmem:[#allocation11 + $0xe0] sm:$0xff]
        %v1032 = vld [vmem:[#allocation11 + $0xe8] sm:$0xff]
        %v1033 = vld [vmem:[#allocation11 + $0xf0] sm:$0xff]
        %v1034 = vld [vmem:[#allocation11 + $0xf8] sm:$0xff]
        %v1067 = vunpack.c.l.b16 %v1003
        %v1068 = vunpack.c.h.b16 %v1003
        %v1069 = vunpack.c.l.b16 %v1004
        %v1070 = vunpack.c.h.b16 %v1004
        %v1071 = vunpack.c.l.b16 %v1005
        %v1072 = vunpack.c.h.b16 %v1005
        %v1073 = vunpack.c.l.b16 %v1006
        %v1074 = vunpack.c.h.b16 %v1006
        %v1075 = vunpack.c.l.b16 %v1007
        %v1076 = vunpack.c.h.b16 %v1007
        %v1077 = vunpack.c.l.b16 %v1008
        %v1078 = vunpack.c.h.b16 %v1008
        %v1079 = vunpack.c.l.b16 %v1009
        %v1080 = vunpack.c.h.b16 %v1009
        %v1081 = vunpack.c.l.b16 %v1010
        %v1082 = vunpack.c.h.b16 %v1010
        %v1083 = vunpack.c.l.b16 %v1011
        %v1084 = vunpack.c.h.b16 %v1011
        %v1085 = vunpack.c.l.b16 %v1012
        %v1086 = vunpack.c.h.b16 %v1012
        %v1087 = vunpack.c.l.b16 %v1013
        %v1088 = vunpack.c.h.b16 %v1013
        %v1089 = vunpack.c.l.b16 %v1014
        %v1090 = vunpack.c.h.b16 %v1014
        %v1091 = vunpack.c.l.b16 %v1015
        %v1092 = vunpack.c.h.b16 %v1015
        %v1093 = vunpack.c.l.b16 %v1016
        %v1094 = vunpack.c.h.b16 %v1016
        %v1095 = vunpack.c.l.b16 %v1017
        %v1096 = vunpack.c.h.b16 %v1017
        %v1097 = vunpack.c.l.b16 %v1018
        %v1098 = vunpack.c.h.b16 %v1018
        %v1099 = vunpack.c.l.b16 %v1019
        %v1100 = vunpack.c.h.b16 %v1019
        %v1101 = vunpack.c.l.b16 %v1020
        %v1102 = vunpack.c.h.b16 %v1020
        %v1103 = vunpack.c.l.b16 %v1021
        %v1104 = vunpack.c.h.b16 %v1021
        %v1105 = vunpack.c.l.b16 %v1022
        %v1106 = vunpack.c.h.b16 %v1022
        %v1107 = vunpack.c.l.b16 %v1023
        %v1108 = vunpack.c.h.b16 %v1023
        %v1109 = vunpack.c.l.b16 %v1024
        %v1110 = vunpack.c.h.b16 %v1024
        %v1111 = vunpack.c.l.b16 %v1025
        %v1112 = vunpack.c.h.b16 %v1025
        %v1113 = vunpack.c.l.b16 %v1026
        %v1114 = vunpack.c.h.b16 %v1026
        %v1115 = vunpack.c.l.b16 %v1027
        %v1116 = vunpack.c.h.b16 %v1027
        %v1117 = vunpack.c.l.b16 %v1028
        %v1118 = vunpack.c.h.b16 %v1028
        %v1119 = vunpack.c.l.b16 %v1029
        %v1120 = vunpack.c.h.b16 %v1029
        %v1121 = vunpack.c.l.b16 %v1030
        %v1122 = vunpack.c.h.b16 %v1030
        %v1123 = vunpack.c.l.b16 %v1031
        %v1124 = vunpack.c.h.b16 %v1031
        %v1125 = vunpack.c.l.b16 %v1032
        %v1126 = vunpack.c.h.b16 %v1032
        %v1127 = vunpack.c.l.b16 %v1033
        %v1128 = vunpack.c.h.b16 %v1033
        %v1129 = vunpack.c.l.b16 %v1034
        %v1130 = vunpack.c.h.b16 %v1034
        %v1131 = vpack.c.b16 %v1071, %v1067
        %v1132 = vpack.c.b16 %v1072, %v1068
        %v1133 = vpack.c.b16 %v1073, %v1069
        %v1134 = vpack.c.b16 %v1074, %v1070
        %v1135 = vpack.c.b16 %v1079, %v1075
        %v1136 = vpack.c.b16 %v1080, %v1076
        %v1137 = vpack.c.b16 %v1081, %v1077
        %v1138 = vpack.c.b16 %v1082, %v1078
        %v1139 = vpack.c.b16 %v1087, %v1083
        %v1140 = vpack.c.b16 %v1088, %v1084
        %v1141 = vpack.c.b16 %v1089, %v1085
        %v1142 = vpack.c.b16 %v1090, %v1086
        %v1143 = vpack.c.b16 %v1095, %v1091
        %v1144 = vpack.c.b16 %v1096, %v1092
        %v1145 = vpack.c.b16 %v1097, %v1093
        %v1146 = vpack.c.b16 %v1098, %v1094
        %v1147 = vpack.c.b16 %v1103, %v1099
        %v1148 = vpack.c.b16 %v1104, %v1100
        %v1149 = vpack.c.b16 %v1105, %v1101
        %v1150 = vpack.c.b16 %v1106, %v1102
        %v1151 = vpack.c.b16 %v1111, %v1107
        %v1152 = vpack.c.b16 %v1112, %v1108
        %v1153 = vpack.c.b16 %v1113, %v1109
        %v1154 = vpack.c.b16 %v1114, %v1110
        %v1155 = vpack.c.b16 %v1119, %v1115
        %v1156 = vpack.c.b16 %v1120, %v1116
        %v1157 = vpack.c.b16 %v1121, %v1117
        %v1158 = vpack.c.b16 %v1122, %v1118
        %v1159 = vpack.c.b16 %v1127, %v1123
        %v1160 = vpack.c.b16 %v1128, %v1124
        %v1161 = vpack.c.b16 %v1129, %v1125
        %v1162 = vpack.c.b16 %v1130, %v1126
        %1195 = vmatpush.bf16.msra.mxu0 %v1159
        %1196 = vmatpush.bf16.msra.mxu0 %v1155
        %1197 = vmatpush.bf16.msra.mxu0 %v1151
        %1198 = vmatpush.bf16.msra.mxu0 %v1147
        %1199 = vmatpush.bf16.msra.mxu0 %v1143
        %1200 = vmatpush.bf16.msra.mxu0 %v1139
        %1201 = vmatpush.bf16.msra.mxu0 %v1135
        %1202 = vmatpush.bf16.msra.mxu0 %v1131
        %1203 = vmatmul.bf16.gmra.mxu0 %v593
        %v1204 = vpop.f32.mrf.mxu0
        %v1205 = vadd.f32 0.0, %v1204
        %v1206 = vpop.f32.mrf.mxu0
        %v1207 = vadd.f32 0.0, %v1206
        %1208 = vdwg.mxu0
        %1209 = vmatpush.bf16.msra.mxu0 %v1160
        %1210 = vmatpush.bf16.msra.mxu0 %v1156
        %1211 = vmatpush.bf16.msra.mxu0 %v1152
        %1212 = vmatpush.bf16.msra.mxu0 %v1148
        %1213 = vmatpush.bf16.msra.mxu0 %v1144
        %1214 = vmatpush.bf16.msra.mxu0 %v1140
        %1215 = vmatpush.bf16.msra.mxu0 %v1136
        %1216 = vmatpush.bf16.msra.mxu0 %v1132
        %1217 = vmatmul.bf16.gmra.mxu0 %v593
        %v1218 = vpop.f32.mrf.mxu0
        %v1219 = vadd.f32 0.0, %v1218
        %v1220 = vpop.f32.mrf.mxu0
        %v1221 = vadd.f32 0.0, %v1220
        %1222 = vdwg.mxu0
        %1223 = vmatpush.bf16.msra.mxu0 %v1161
        %1224 = vmatpush.bf16.msra.mxu0 %v1157
        %1225 = vmatpush.bf16.msra.mxu0 %v1153
        %1226 = vmatpush.bf16.msra.mxu0 %v1149
        %1227 = vmatpush.bf16.msra.mxu0 %v1145
        %1228 = vmatpush.bf16.msra.mxu0 %v1141
        %1229 = vmatpush.bf16.msra.mxu0 %v1137
        %1230 = vmatpush.bf16.msra.mxu0 %v1133
        %1231 = vmatmul.bf16.gmra.mxu0 %v593
        %v1232 = vpop.f32.mrf.mxu0
        %v1233 = vadd.f32 0.0, %v1232
        %v1234 = vpop.f32.mrf.mxu0
        %v1235 = vadd.f32 0.0, %v1234
        %1236 = vdwg.mxu0
        %1237 = vmatpush.bf16.msra.mxu0 %v1162
        %1238 = vmatpush.bf16.msra.mxu0 %v1158
        %1239 = vmatpush.bf16.msra.mxu0 %v1154
        %1240 = vmatpush.bf16.msra.mxu0 %v1150
        %1241 = vmatpush.bf16.msra.mxu0 %v1146
        %1242 = vmatpush.bf16.msra.mxu0 %v1142
        %1243 = vmatpush.bf16.msra.mxu0 %v1138
        %1244 = vmatpush.bf16.msra.mxu0 %v1134
        %1245 = vmatmul.bf16.gmra.mxu0 %v593
        %v1246 = vpop.f32.mrf.mxu0
        %v1247 = vadd.f32 0.0, %v1246
        %v1248 = vpop.f32.mrf.mxu0
        %v1249 = vadd.f32 0.0, %v1248
        %1250 = vdwg.mxu0
        %v1283 = vunpack.c.l.b16 %v971
        %v1284 = vunpack.c.h.b16 %v971
        %v1285 = vunpack.c.l.b16 %v972
        %v1286 = vunpack.c.h.b16 %v972
        %v1287 = vunpack.c.l.b16 %v973
        %v1288 = vunpack.c.h.b16 %v973
        %v1289 = vunpack.c.l.b16 %v974
        %v1290 = vunpack.c.h.b16 %v974
        %v1291 = vunpack.c.l.b16 %v975
        %v1292 = vunpack.c.h.b16 %v975
        %v1293 = vunpack.c.l.b16 %v976
        %v1294 = vunpack.c.h.b16 %v976
        %v1295 = vunpack.c.l.b16 %v977
        %v1296 = vunpack.c.h.b16 %v977
        %v1297 = vunpack.c.l.b16 %v978
        %v1298 = vunpack.c.h.b16 %v978
        %v1299 = vunpack.c.l.b16 %v979
        %v1300 = vunpack.c.h.b16 %v979
        %v1301 = vunpack.c.l.b16 %v980
        %v1302 = vunpack.c.h.b16 %v980
        %v1303 = vunpack.c.l.b16 %v981
        %v1304 = vunpack.c.h.b16 %v981
        %v1305 = vunpack.c.l.b16 %v982
        %v1306 = vunpack.c.h.b16 %v982
        %v1307 = vunpack.c.l.b16 %v983
        %v1308 = vunpack.c.h.b16 %v983
        %v1309 = vunpack.c.l.b16 %v984
        %v1310 = vunpack.c.h.b16 %v984
        %v1311 = vunpack.c.l.b16 %v985
        %v1312 = vunpack.c.h.b16 %v985
        %v1313 = vunpack.c.l.b16 %v986
        %v1314 = vunpack.c.h.b16 %v986
        %v1315 = vunpack.c.l.b16 %v987
        %v1316 = vunpack.c.h.b16 %v987
        %v1317 = vunpack.c.l.b16 %v988
        %v1318 = vunpack.c.h.b16 %v988
        %v1319 = vunpack.c.l.b16 %v989
        %v1320 = vunpack.c.h.b16 %v989
        %v1321 = vunpack.c.l.b16 %v990
        %v1322 = vunpack.c.h.b16 %v990
        %v1323 = vunpack.c.l.b16 %v991
        %v1324 = vunpack.c.h.b16 %v991
        %v1325 = vunpack.c.l.b16 %v992
        %v1326 = vunpack.c.h.b16 %v992
        %v1327 = vunpack.c.l.b16 %v993
        %v1328 = vunpack.c.h.b16 %v993
        %v1329 = vunpack.c.l.b16 %v994
        %v1330 = vunpack.c.h.b16 %v994
        %v1331 = vunpack.c.l.b16 %v995
        %v1332 = vunpack.c.h.b16 %v995
        %v1333 = vunpack.c.l.b16 %v996
        %v1334 = vunpack.c.h.b16 %v996
        %v1335 = vunpack.c.l.b16 %v997
        %v1336 = vunpack.c.h.b16 %v997
        %v1337 = vunpack.c.l.b16 %v998
        %v1338 = vunpack.c.h.b16 %v998
        %v1339 = vunpack.c.l.b16 %v999
        %v1340 = vunpack.c.h.b16 %v999
        %v1341 = vunpack.c.l.b16 %v1000
        %v1342 = vunpack.c.h.b16 %v1000
        %v1343 = vunpack.c.l.b16 %v1001
        %v1344 = vunpack.c.h.b16 %v1001
        %v1345 = vunpack.c.l.b16 %v1002
        %v1346 = vunpack.c.h.b16 %v1002
        %v1347 = vpack.c.b16 %v1287, %v1283
        %v1348 = vpack.c.b16 %v1288, %v1284
        %v1349 = vpack.c.b16 %v1289, %v1285
        %v1350 = vpack.c.b16 %v1290, %v1286
        %v1351 = vpack.c.b16 %v1295, %v1291
        %v1352 = vpack.c.b16 %v1296, %v1292
        %v1353 = vpack.c.b16 %v1297, %v1293
        %v1354 = vpack.c.b16 %v1298, %v1294
        %v1355 = vpack.c.b16 %v1303, %v1299
        %v1356 = vpack.c.b16 %v1304, %v1300
        %v1357 = vpack.c.b16 %v1305, %v1301
        %v1358 = vpack.c.b16 %v1306, %v1302
        %v1359 = vpack.c.b16 %v1311, %v1307
        %v1360 = vpack.c.b16 %v1312, %v1308
        %v1361 = vpack.c.b16 %v1313, %v1309
        %v1362 = vpack.c.b16 %v1314, %v1310
        %v1363 = vpack.c.b16 %v1319, %v1315
        %v1364 = vpack.c.b16 %v1320, %v1316
        %v1365 = vpack.c.b16 %v1321, %v1317
        %v1366 = vpack.c.b16 %v1322, %v1318
        %v1367 = vpack.c.b16 %v1327, %v1323
        %v1368 = vpack.c.b16 %v1328, %v1324
        %v1369 = vpack.c.b16 %v1329, %v1325
        %v1370 = vpack.c.b16 %v1330, %v1326
        %v1371 = vpack.c.b16 %v1335, %v1331
        %v1372 = vpack.c.b16 %v1336, %v1332
        %v1373 = vpack.c.b16 %v1337, %v1333
        %v1374 = vpack.c.b16 %v1338, %v1334
        %v1375 = vpack.c.b16 %v1343, %v1339
        %v1376 = vpack.c.b16 %v1344, %v1340
        %v1377 = vpack.c.b16 %v1345, %v1341
        %v1378 = vpack.c.b16 %v1346, %v1342
        %1411 = vmatpush.bf16.msra.mxu0 %v1375
        %1412 = vmatpush.bf16.msra.mxu0 %v1371
        %1413 = vmatpush.bf16.msra.mxu0 %v1367
        %1414 = vmatpush.bf16.msra.mxu0 %v1363
        %1415 = vmatpush.bf16.msra.mxu0 %v1359
        %1416 = vmatpush.bf16.msra.mxu0 %v1355
        %1417 = vmatpush.bf16.msra.mxu0 %v1351
        %1418 = vmatpush.bf16.msra.mxu0 %v1347
        %1419 = vmatmul.bf16.gmra.mxu0 %v970
        %v1420 = vpop.f32.mrf.mxu0
        %v1421 = vadd.f32 %v1205, %v1420
        %v1422 = vpop.f32.mrf.mxu0
        %v1423 = vadd.f32 %v1207, %v1422
        %1424 = vdwg.mxu0
        %1425 = vmatpush.bf16.msra.mxu0 %v1376
        %1426 = vmatpush.bf16.msra.mxu0 %v1372
        %1427 = vmatpush.bf16.msra.mxu0 %v1368
        %1428 = vmatpush.bf16.msra.mxu0 %v1364
        %1429 = vmatpush.bf16.msra.mxu0 %v1360
        %1430 = vmatpush.bf16.msra.mxu0 %v1356
        %1431 = vmatpush.bf16.msra.mxu0 %v1352
        %1432 = vmatpush.bf16.msra.mxu0 %v1348
        %1433 = vmatmul.bf16.gmra.mxu0 %v970
        %v1434 = vpop.f32.mrf.mxu0
        %v1435 = vadd.f32 %v1219, %v1434
        %v1436 = vpop.f32.mrf.mxu0
        %v1437 = vadd.f32 %v1221, %v1436
        %1438 = vdwg.mxu0
        %1439 = vmatpush.bf16.msra.mxu0 %v1377
        %1440 = vmatpush.bf16.msra.mxu0 %v1373
        %1441 = vmatpush.bf16.msra.mxu0 %v1369
        %1442 = vmatpush.bf16.msra.mxu0 %v1365
        %1443 = vmatpush.bf16.msra.mxu0 %v1361
        %1444 = vmatpush.bf16.msra.mxu0 %v1357
        %1445 = vmatpush.bf16.msra.mxu0 %v1353
        %1446 = vmatpush.bf16.msra.mxu0 %v1349
        %1447 = vmatmul.bf16.gmra.mxu0 %v970
        %v1448 = vpop.f32.mrf.mxu0
        %v1449 = vadd.f32 %v1233, %v1448
        %v1450 = vpop.f32.mrf.mxu0
        %v1451 = vadd.f32 %v1235, %v1450
        %1452 = vdwg.mxu0
        %1453 = vmatpush.bf16.msra.mxu0 %v1378
        %1454 = vmatpush.bf16.msra.mxu0 %v1374
        %1455 = vmatpush.bf16.msra.mxu0 %v1370
        %1456 = vmatpush.bf16.msra.mxu0 %v1366
        %1457 = vmatpush.bf16.msra.mxu0 %v1362
        %1458 = vmatpush.bf16.msra.mxu0 %v1358
        %1459 = vmatpush.bf16.msra.mxu0 %v1354
        %1460 = vmatpush.bf16.msra.mxu0 %v1350
        %1461 = vmatmul.bf16.gmra.mxu0 %v970
        %v1462 = vpop.f32.mrf.mxu0
        %v1463 = vadd.f32 %v1247, %v1462
        %v1464 = vpop.f32.mrf.mxu0
        %v1465 = vadd.f32 %v1249, %v1464
        %1466 = vdwg.mxu0
        %1467 = vst [vmem:[%s574] sm:$0xff] %v1421
        %1468 = vst [vmem:[%s574 + $0x8] sm:$0xff] %v1435
        %1469 = vst [vmem:[%s574 + $0x10] sm:$0xff] %v1449
        %1470 = vst [vmem:[%s574 + $0x18] sm:$0xff] %v1463
        %1471 = vst [vmem:[%s574 + $0x20] sm:$0xff] %v1423
        %1472 = vst [vmem:[%s574 + $0x28] sm:$0xff] %v1437
        %1473 = vst [vmem:[%s574 + $0x30] sm:$0xff] %v1451
        %1474 = vst [vmem:[%s574 + $0x38] sm:$0xff] %v1465
        %s1475 = sand.u32 %s320, 1
        %s1476 = scalar_lea.sflag [#allocation4], %s1475
        %s1477 = sand.u32 %s320, 1
        %s1478 = smul.addr %s1477, 64
        %s1479 = scalar_lea.vmem [#allocation16], %s1478
        // Predicated region
        $region105: #{tpu_custom_call.1} parent=71 // pred_check
          %p1480 = pneg %p330
        $region106: #{tpu_custom_call.1} parent=71 // pred_check_branch
          %1482 = sbr.rel (%p1480) target = $region108
        $region107: #{tpu_custom_call.1} parent=71 // pred_region
          %s1483 = smul.u32 2, %s34
          %1485 = vsyncadd %s1476, 0
          %s1486 = smul.addr %s1483, 4
          %s1487 = smul.addr %s1486, 8
          %s1488 = scalar_lea.hbm %s13, %s1487
          %s1489 = sshll.u32 %s1479, 4
          %s1490 = int_to_ptr.vmem [resolvable:$true] %s1489
          %s1491 = sshll.u32 %s1488, 4
          %s1492 = int_to_ptr.hbm [resolvable:$true] %s1491
          %1497 = dma.vmem_to_hbm [thread:$0]  %s1490, 1024, %s1492, %s1476, 512, 512, 32
        $region108: #{tpu_custom_call.1} parent=71 // pred_fallthru
          _
      $region72: #{tpu_custom_call.1} parent=5 // pred_fallthru
        _
      %p1498 = scmp.le.s32.totalorder 2, %s29
      // Predicated region
      $region109: #{tpu_custom_call.1} parent=5 // pred_check
        %p1499 = pneg %p1498
      $region110: #{tpu_custom_call.1} parent=5 // pred_check_branch
        %1501 = sbr.rel (%p1499) target = $region112
      $region111: #{tpu_custom_call.1} parent=5 // pred_region
        %s1502 = ssub.s32 %s29, 2
        // Predicated region
        $region113: #{tpu_custom_call.1} parent=111 // pred_check
          %p1503 = pneg %p336
        $region114: #{tpu_custom_call.1} parent=111 // pred_check_branch
          %1505 = sbr.rel (%p1503) target = $region116
        $region115: #{tpu_custom_call.1} parent=111 // pred_region
          %s1506 = sand.u32 %s321, 1
          %s1507 = scalar_lea.sflag [#allocation4], %s1506
          %s1508 = sand.u32 %s321, 1
          %s1509 = smul.addr %s1508, 64
          %s1510 = scalar_lea.vmem [#allocation16], %s1509
          %1512 = dma.done %s1507, 1024
        $region116: #{tpu_custom_call.1} parent=111 // pred_fallthru
          _
      $region112: #{tpu_custom_call.1} parent=5 // pred_fallthru
        _
    $region6: #{tpu_custom_call.1} parent=1 // loop_footer
      %s33 = sadd.s32 1, %s29
    $region7: #{tpu_custom_call.1} parent=1 // loop_footer_branch
      %28 = sbr.rel target = $region3
    $region8: #{tpu_custom_call.1} parent=1 // loop_exit
      _
    %1513 = vsyncpa [#allocation3], 1
    %s1514 = scalar_lea.sflag [#allocation3], 1
    %1515 = vsyncpa %s1514, 1
    %1516 = vsyncpa [#allocation6], 1
    %1517 = vsyncpa [#allocation9], 1
    %1518 = vsyncpa [#allocation12], 1
    %1519 = vsyncpa [#allocation15], 1
    %1520 = vsyncpa [#allocation4], 1
    %s1521 = scalar_lea.sflag [#allocation4], 1
    %1522 = vsyncpa %s1521, 1

</llo_original>
